<compile_context>
chip_gen: v6e
topology: v6e:2x2x1
jax: 0.10.0
libtpu: 0.0.40
codegen_flags: <defaults>
</compile_context>

<pallas_src>
import functools

import jax
import jax.numpy as jnp
from jax import lax
from jax.experimental import pallas as pl
from jax.experimental.pallas import tpu as pltpu


# ----------------------------- Pallas kernel ------------------------------ #
def _conv_rows_kernel(x_ref, w_ref, b_ref, o_ref, *, kh, kw, th, wo):
    """Tap-accumulated conv GEMM for `th` output rows of one image.

    x_ref: (Hi, Cin, Wi)   full padded image (resident across row tiles)
    w_ref: (kh*kw, Cout, Cin)
    b_ref: (Cout, 1)       float32
    o_ref: (th, Cout, Wo)  output row tile; W (the long spatial axis) on lanes
    """
    r0 = pl.program_id(1) * th
    bias = b_ref[...]                                  # (Cout, 1) f32
    # Weight taps: loaded once per program, reused by every output row.
    w_taps = [w_ref[t] for t in range(kh * kw)]        # each (Cout, Cin)
    # Rolling window of input rows: only the newly-needed row is loaded per
    # output row; kh rows are live at any time.
    rows = [x_ref[r0 + s] for s in range(kh - 1)]      # each (Cin, Wi)
    for r in range(th):                                # static unroll, th <= 8
        rows.append(x_ref[r0 + r + kh - 1])
        acc = None
        for di in range(kh):
            x_row = rows[di]
            for dj in range(kw):
                x_tap = x_row[:, dj:dj + wo]           # (Cin, Wo), static slice
                part = jnp.dot(w_taps[di * kw + dj], x_tap,
                               preferred_element_type=jnp.float32)
                acc = part if acc is None else acc + part
        rows.pop(0)
        o_ref[r] = jnp.maximum(acc + bias, 0.0).astype(o_ref.dtype)


def _row_tile(ho, cap=8):
    """Largest divisor of `ho` that is <= cap (bounds unrolled dots/program)."""
    for t in range(min(ho, cap), 0, -1):
        if ho % t == 0:
            return t
    return 1


def conv3x3_block_pallas(x_bhcw, w_hwio, b, *, stride):
    """3x3 conv (pad=1, stride 1 or 2) + bias + ReLU.

    x_bhcw: (B, H, C, W) activation, channels-third layout (W on lanes).
    Returns (B, Ho, Cout, Wo) in the same layout / dtype.
    """
    dtype = x_bhcw.dtype
    B, H, C, W = x_bhcw.shape
    Cout = w_hwio.shape[-1]
    w_hwio = w_hwio.astype(dtype)

    xp = jnp.pad(x_bhcw, ((0, 0), (1, 1), (0, 0), (1, 1)))
    if stride == 1:
        kh = kw = 3
        Ho, Wo = H, W
        Ce = C
        x_in = xp                                          # (B, H+2, C, W+2)
        w_taps = w_hwio                                    # (3, 3, C, Cout)
    else:
        # stride 2  ==  stride-1 2x2 conv on space-to-depth phases (4*C channels).
        kh = kw = 2
        Ho = (H - 1) // 2 + 1
        Wo = (W - 1) // 2 + 1
        Ce = 4 * C
        phases = []
        for p in range(2):
            for q in range(2):
                ph = xp[:, p::2, :, q::2][:, :Ho + 1, :, :Wo + 1]
                pad_h = (Ho + 1) - ph.shape[1]
                pad_w = (Wo + 1) - ph.shape[3]
                if pad_h or pad_w:
                    ph = jnp.pad(ph, ((0, 0), (0, pad_h), (0, 0), (0, pad_w)))
                phases.append(ph)
        x_in = jnp.concatenate(phases, axis=2)             # (B, Ho+1, 4C, Wo+1)
        w_taps = jnp.zeros((2, 2, Ce, Cout), dtype)
        for a in range(2):
            for e in range(2):
                for p in range(2):
                    for q in range(2):
                        di, dj = 2 * a + p, 2 * e + q
                        if di < 3 and dj < 3:
                            blk = slice((2 * p + q) * C, (2 * p + q + 1) * C)
                            w_taps = w_taps.at[a, e, blk, :].set(w_hwio[di, dj])
    Hi, Wi = x_in.shape[1], x_in.shape[3]

    # GEMM-shaped weights (taps, Cout, Cin) and an f32 bias column.
    w_k = jnp.transpose(w_taps, (0, 1, 3, 2)).reshape(kh * kw, Cout, Ce).astype(dtype)
    b_k = b.astype(jnp.float32).reshape(Cout, 1)

    th = _row_tile(Ho)
    grid = (B, Ho // th)

    itemsize = jnp.dtype(dtype).itemsize
    x_blk = Hi * Ce * Wi * itemsize
    o_blk = th * Cout * Wo * itemsize
    w_bytes = kh * kw * Cout * Ce * itemsize + Cout * 4
    vmem_need = 2 * (x_blk + o_blk) + w_bytes              # double-buffered blocks
    vmem_limit = int(min(48 * 2**20, max(4 * 2**20, 4 * vmem_need)))

    flops = 2 * B * Ho * Wo * kh * kw * Ce * Cout
    bytes_accessed = (B * Hi * Ce * Wi + B * Ho * Cout * Wo) * itemsize + w_bytes

    kernel = functools.partial(_conv_rows_kernel, kh=kh, kw=kw, th=th, wo=Wo)
    out = pl.pallas_call(
        kernel,
        out_shape=jax.ShapeDtypeStruct((B, Ho, Cout, Wo), dtype),
        grid=grid,
        in_specs=[
            # Full padded image per batch element; resident across row tiles
            # (index_map ignores the row-tile index -> no re-fetch).
            pl.BlockSpec((None, Hi, Ce, Wi), lambda bb, rt: (bb, 0, 0, 0)),
            pl.BlockSpec((kh * kw, Cout, Ce), lambda bb, rt: (0, 0, 0)),
            pl.BlockSpec((Cout, 1), lambda bb, rt: (0, 0)),
        ],
        out_specs=pl.BlockSpec((None, th, Cout, Wo), lambda bb, rt: (bb, rt, 0, 0)),
        compiler_params=pltpu.CompilerParams(
            dimension_semantics=("parallel", "parallel"),
            vmem_limit_bytes=vmem_limit),
        cost_estimate=pl.CostEstimate(flops=flops, transcendentals=0,
                                      bytes_accessed=bytes_accessed),
    )(x_in, w_k, b_k)
    return out


def conv3x3_block_ref(x_bhcw, w_hwio, b, *, stride):
    """Pure-JAX (lax.conv) reference with identical dtypes / epilogue."""
    dtype = x_bhcw.dtype
    xw = jnp.transpose(x_bhcw, (0, 1, 3, 2))               # (B, H, W, C)
    y = lax.conv_general_dilated(
        xw, w_hwio.astype(dtype), (stride, stride), [(1, 1), (1, 1)],
        dimension_numbers=("NHWC", "HWIO", "NHWC"),
        preferred_element_type=jnp.float32)
    y = jnp.maximum(y + b.astype(jnp.float32), 0.0).astype(dtype)
    return jnp.transpose(y, (0, 1, 3, 2))                  # (B, Ho, Cout, Wo)


# --------------------------- synthetic backbone ---------------------------- #
# Mini ResNet-style body: stem + layer1..layer4 (each one conv3x3+ReLU block).
_BACKBONE_SPECS = (
    # (name,   cin, cout, stride)
    ("stem",    3,   8,   2),
    ("layer1",  8,   8,   1),
    ("layer2",  8,  16,   2),
    ("layer3", 16,  32,   2),
    ("layer4", 32,  64,   2),
)
NUM_CHANNELS = 64                               # BackboneBase.num_channels
RETURN_INTERM_LAYERS = True
RETURN_LAYERS = ({"layer1": "0", "layer2": "1", "layer3": "2", "layer4": "3"}
                 if RETURN_INTERM_LAYERS else {"layer4": "0"})


def init_backbone_params(key):
    params = {}
    for i, (name, cin, cout, stride) in enumerate(_BACKBONE_SPECS):
        kw_, kb_ = jax.random.split(jax.random.fold_in(key, i))
        w = jax.random.normal(kw_, (3, 3, cin, cout), jnp.float32)
        w = w * (1.0 / (3 * 3 * cin) ** 0.5)
        b = 0.01 * jax.random.normal(kb_, (cout,), jnp.float32)
        params[name] = (w, b, stride)
    return params


def backbone_base_forward(params, tensors_nchw, mask, *,
                          conv_fn=conv3x3_block_pallas,
                          compute_dtype=jnp.bfloat16):
    """Mirrors BackboneBase.forward on a NestedTensor (tensors, mask).

    tensors_nchw: float32 [B, 3, H, W];  mask: bool [B, H, W]
    returns: dict name -> (features NCHW float32, mask bool at feature res)
    """
    # NCHW -> (B, H, C, W): keeps the long spatial W axis on lanes in-kernel.
    x = jnp.transpose(tensors_nchw, (0, 2, 1, 3)).astype(compute_dtype)
    xs = {}
    for name, _cin, _cout, _stride in _BACKBONE_SPECS:
        w, b, stride = params[name]
        x = conv_fn(x, w, b, stride=stride)
        if name in RETURN_LAYERS:
            xs[RETURN_LAYERS[name]] = x

    out = {}
    B, H, W = mask.shape
    for name, feat in xs.items():
        Hf, Wf = feat.shape[1], feat.shape[3]
        feat_nchw = jnp.transpose(feat, (0, 2, 1, 3)).astype(jnp.float32)
        # F.interpolate(m[None].float(), size=(Hf, Wf)) defaults to 'nearest':
        # src_index = floor(dst_index * in/out); then .to(bool)[0].
        idx_h = (jnp.arange(Hf) * H) // Hf
        idx_w = (jnp.arange(Wf) * W) // Wf
        m = mask[:, idx_h][:, :, idx_w].astype(jnp.bool_)
        out[name] = (feat_nchw, m)
    return out


# --------------------------------- main ------------------------------------ #
if __name__ == "__main__":
    key = jax.random.PRNGKey(0)
    params = init_backbone_params(jax.random.fold_in(key, 100))

    B, C, H, W = 2, 3, 32, 32
    x_nchw = jax.random.normal(jax.random.fold_in(key, 1), (B, C, H, W), jnp.float32)
    # Padding mask like NestedTensor: True where padded (right side of image).
    valid_w = jnp.array([28, 24])
    mask = jnp.arange(W)[None, None, :] >= valid_w[:, None, None]
    mask = jnp.broadcast_to(mask, (B, H, W))

    # Performance path: bf16 operands, f32 accumulation.
    out_bf16 = backbone_base_forward(params, x_nchw, mask,
                                     conv_fn=conv3x3_block_pallas,
                                     compute_dtype=jnp.bfloat16)
    out_bf16 = jax.tree_util.tree_map(jax.block_until_ready, out_bf16)

    # Correctness: f32 Pallas path vs pure-JAX lax.conv reference (tight),
    # plus a looser check of the bf16 path against a bf16 lax.conv reference.
    out_f32 = backbone_base_forward(params, x_nchw, mask,
                                    conv_fn=conv3x3_block_pallas,
                                    compute_dtype=jnp.float32)
    ref_f32 = backbone_base_forward(params, x_nchw, mask,
                                    conv_fn=conv3x3_block_ref,
                                    compute_dtype=jnp.float32)
    ref_bf16 = backbone_base_forward(params, x_nchw, mask,
                                     conv_fn=conv3x3_block_ref,
                                     compute_dtype=jnp.bfloat16)

    for name in ref_f32:
        feat, m = out_f32[name]
        feat_r, m_r = ref_f32[name]
        assert feat.shape == feat_r.shape and feat.dtype == jnp.float32
        assert m.dtype == jnp.bool_ and m.shape == feat.shape[:1] + feat.shape[2:]
        assert jnp.allclose(feat, feat_r, atol=2e-3, rtol=2e-3), name
        assert jnp.array_equal(m, m_r)

        feat_b, m_b = out_bf16[name]
        feat_br, _ = ref_bf16[name]
        assert feat_b.shape == feat.shape and feat_b.dtype == jnp.float32
        assert jnp.allclose(feat_b, feat_br, atol=5e-2, rtol=5e-2), name
        assert jnp.array_equal(m_b, m)

    print("KERNEL_OK")
</pallas_src>

<mosaic_0001>
module attributes {stable_mosaic.version = 11 : i64} {
  func.func @_conv_rows_kernel(%arg0: i32, %arg1: i32, %arg2: memref<1x17x12x17xbf16, #tpu.memory_space<vmem>>, %arg3: memref<4x8x12xbf16, #tpu.memory_space<vmem>>, %arg4: memref<8x1xf32, #tpu.memory_space<vmem>>, %arg5: memref<1x8x8x16xbf16, #tpu.memory_space<vmem>>) attributes {dimension_semantics = [#tpu.dimension_semantics<parallel>, #tpu.dimension_semantics<parallel>], iteration_bounds = array<i64: 2, 2>, scalar_prefetch = 0 : i64, scratch_operands = 0 : i64, tpu.core_type = #tpu.core_type<tc>, window_params = [{transform_indices = @transform_0, window_bounds = array<i64: 1, 17, 12, 17>}, {pipeline_mode = #tpu.pipeline_mode<synchronous>, transform_indices = @transform_1, window_bounds = array<i64: 4, 8, 12>}, {pipeline_mode = #tpu.pipeline_mode<synchronous>, transform_indices = @transform_2, window_bounds = array<i64: 8, 1>}, {transform_indices = @transform_3, window_bounds = array<i64: 1, 8, 8, 16>}]} {
    %c8_i32 = arith.constant 8 : i32
    %0 = arith.muli %arg1, %c8_i32 : i32
    %c0 = arith.constant 0 : index
    %c0_0 = arith.constant 0 : index
    %1 = vector.load %arg4[%c0, %c0_0] : memref<8x1xf32, #tpu.memory_space<vmem>>, vector<8x1xf32>
    %c0_1 = arith.constant 0 : index
    %c0_2 = arith.constant 0 : index
    %c0_3 = arith.constant 0 : index
    %2 = vector.load %arg3[%c0_1, %c0_2, %c0_3] : memref<4x8x12xbf16, #tpu.memory_space<vmem>>, vector<1x8x12xbf16>
    %3 = vector.shape_cast %2 : vector<1x8x12xbf16> to vector<8x12xbf16>
    %c1 = arith.constant 1 : index
    %c0_4 = arith.constant 0 : index
    %c0_5 = arith.constant 0 : index
    %4 = vector.load %arg3[%c1, %c0_4, %c0_5] : memref<4x8x12xbf16, #tpu.memory_space<vmem>>, vector<1x8x12xbf16>
    %5 = vector.shape_cast %4 : vector<1x8x12xbf16> to vector<8x12xbf16>
    %c2 = arith.constant 2 : index
    %c0_6 = arith.constant 0 : index
    %c0_7 = arith.constant 0 : index
    %6 = vector.load %arg3[%c2, %c0_6, %c0_7] : memref<4x8x12xbf16, #tpu.memory_space<vmem>>, vector<1x8x12xbf16>
    %7 = vector.shape_cast %6 : vector<1x8x12xbf16> to vector<8x12xbf16>
    %c3 = arith.constant 3 : index
    %c0_8 = arith.constant 0 : index
    %c0_9 = arith.constant 0 : index
    %8 = vector.load %arg3[%c3, %c0_8, %c0_9] : memref<4x8x12xbf16, #tpu.memory_space<vmem>>, vector<1x8x12xbf16>
    %9 = vector.shape_cast %8 : vector<1x8x12xbf16> to vector<8x12xbf16>
    %c0_i32 = arith.constant 0 : i32
    %10 = arith.addi %0, %c0_i32 : i32
    %c0_10 = arith.constant 0 : index
    %11 = arith.index_cast %10 : i32 to index
    %c0_11 = arith.constant 0 : index
    %c0_12 = arith.constant 0 : index
    %12 = vector.load %arg2[%c0_10, %11, %c0_11, %c0_12] : memref<1x17x12x17xbf16, #tpu.memory_space<vmem>>, vector<1x1x12x17xbf16>
    %13 = vector.shape_cast %12 : vector<1x1x12x17xbf16> to vector<12x17xbf16>
    %c0_i32_13 = arith.constant 0 : i32
    %14 = arith.addi %0, %c0_i32_13 : i32
    %c2_i32 = arith.constant 2 : i32
    %15 = arith.addi %14, %c2_i32 : i32
    %c1_i32 = arith.constant 1 : i32
    %16 = arith.subi %15, %c1_i32 : i32
    %c0_14 = arith.constant 0 : index
    %17 = arith.index_cast %16 : i32 to index
    %c0_15 = arith.constant 0 : index
    %c0_16 = arith.constant 0 : index
    %18 = vector.load %arg2[%c0_14, %17, %c0_15, %c0_16] : memref<1x17x12x17xbf16, #tpu.memory_space<vmem>>, vector<1x1x12x17xbf16>
    %19 = vector.shape_cast %18 : vector<1x1x12x17xbf16> to vector<12x17xbf16>
    %20 = vector.extract_strided_slice %13 {offsets = [0, 0], sizes = [12, 16], strides = [1, 1]} : vector<12x17xbf16> to vector<12x16xbf16>
    %cst = arith.constant dense<0.000000e+00> : vector<8x16xf32>
    %21 = tpu.matmul %3, %20, %cst {dimension_numbers = #tpu.dot_dimension_numbers<[1], [0], [0], [1], [0, 0, 1, 1], [], []>} : vector<8x12xbf16>, vector<12x16xbf16>, vector<8x16xf32> -> vector<8x16xf32>
    %22 = vector.extract_strided_slice %13 {offsets = [0, 1], sizes = [12, 16], strides = [1, 1]} : vector<12x17xbf16> to vector<12x16xbf16>
    %cst_17 = arith.constant dense<0.000000e+00> : vector<8x16xf32>
    %23 = tpu.matmul %5, %22, %cst_17 {dimension_numbers = #tpu.dot_dimension_numbers<[1], [0], [0], [1], [0, 0, 1, 1], [], []>} : vector<8x12xbf16>, vector<12x16xbf16>, vector<8x16xf32> -> vector<8x16xf32>
    %24 = arith.addf %21, %23 : vector<8x16xf32>
    %25 = vector.extract_strided_slice %19 {offsets = [0, 0], sizes = [12, 16], strides = [1, 1]} : vector<12x17xbf16> to vector<12x16xbf16>
    %cst_18 = arith.constant dense<0.000000e+00> : vector<8x16xf32>
    %26 = tpu.matmul %7, %25, %cst_18 {dimension_numbers = #tpu.dot_dimension_numbers<[1], [0], [0], [1], [0, 0, 1, 1], [], []>} : vector<8x12xbf16>, vector<12x16xbf16>, vector<8x16xf32> -> vector<8x16xf32>
    %27 = arith.addf %24, %26 : vector<8x16xf32>
    %28 = vector.extract_strided_slice %19 {offsets = [0, 1], sizes = [12, 16], strides = [1, 1]} : vector<12x17xbf16> to vector<12x16xbf16>
    %cst_19 = arith.constant dense<0.000000e+00> : vector<8x16xf32>
    %29 = tpu.matmul %9, %28, %cst_19 {dimension_numbers = #tpu.dot_dimension_numbers<[1], [0], [0], [1], [0, 0, 1, 1], [], []>} : vector<8x12xbf16>, vector<12x16xbf16>, vector<8x16xf32> -> vector<8x16xf32>
    %30 = arith.addf %27, %29 : vector<8x16xf32>
    %31 = vector.broadcast %1 : vector<8x1xf32> to vector<8x16xf32>
    %32 = arith.addf %30, %31 : vector<8x16xf32>
    %cst_20 = arith.constant 0.000000e+00 : f32
    %33 = vector.broadcast %cst_20 : f32 to vector<8x16xf32>
    %34 = arith.maximumf %32, %33 : vector<8x16xf32>
    %35 = arith.truncf %34 : vector<8x16xf32> to vector<8x16xbf16>
    %c0_21 = arith.constant 0 : index
    %c0_22 = arith.constant 0 : index
    %c0_23 = arith.constant 0 : index
    %c0_24 = arith.constant 0 : index
    %36 = vector.load %arg5[%c0_21, %c0_22, %c0_23, %c0_24] : memref<1x8x8x16xbf16, #tpu.memory_space<vmem>>, vector<1x1x8x16xbf16>
    %37 = vector.shape_cast %36 : vector<1x1x8x16xbf16> to vector<8x16xbf16>
    %38 = vector.shape_cast %35 : vector<8x16xbf16> to vector<1x1x8x16xbf16>
    tpu.vector_store %arg5[%c0_21, %c0_22, %c0_23, %c0_24], %38 {strides = array<i32>} : memref<1x8x8x16xbf16, #tpu.memory_space<vmem>>, vector<1x1x8x16xbf16>,
    %c1_i32_25 = arith.constant 1 : i32
    %39 = arith.addi %0, %c1_i32_25 : i32
    %c2_i32_26 = arith.constant 2 : i32
    %40 = arith.addi %39, %c2_i32_26 : i32
    %c1_i32_27 = arith.constant 1 : i32
    %41 = arith.subi %40, %c1_i32_27 : i32
    %c0_28 = arith.constant 0 : index
    %42 = arith.index_cast %41 : i32 to index
    %c0_29 = arith.constant 0 : index
    %c0_30 = arith.constant 0 : index
    %43 = vector.load %arg2[%c0_28, %42, %c0_29, %c0_30] : memref<1x17x12x17xbf16, #tpu.memory_space<vmem>>, vector<1x1x12x17xbf16>
    %44 = vector.shape_cast %43 : vector<1x1x12x17xbf16> to vector<12x17xbf16>
    %45 = vector.extract_strided_slice %19 {offsets = [0, 0], sizes = [12, 16], strides = [1, 1]} : vector<12x17xbf16> to vector<12x16xbf16>
    %cst_31 = arith.constant dense<0.000000e+00> : vector<8x16xf32>
    %46 = tpu.matmul %3, %45, %cst_31 {dimension_numbers = #tpu.dot_dimension_numbers<[1], [0], [0], [1], [0, 0, 1, 1], [], []>} : vector<8x12xbf16>, vector<12x16xbf16>, vector<8x16xf32> -> vector<8x16xf32>
    %47 = vector.extract_strided_slice %19 {offsets = [0, 1], sizes = [12, 16], strides = [1, 1]} : vector<12x17xbf16> to vector<12x16xbf16>
    %cst_32 = arith.constant dense<0.000000e+00> : vector<8x16xf32>
    %48 = tpu.matmul %5, %47, %cst_32 {dimension_numbers = #tpu.dot_dimension_numbers<[1], [0], [0], [1], [0, 0, 1, 1], [], []>} : vector<8x12xbf16>, vector<12x16xbf16>, vector<8x16xf32> -> vector<8x16xf32>
    %49 = arith.addf %46, %48 : vector<8x16xf32>
    %50 = vector.extract_strided_slice %44 {offsets = [0, 0], sizes = [12, 16], strides = [1, 1]} : vector<12x17xbf16> to vector<12x16xbf16>
    %cst_33 = arith.constant dense<0.000000e+00> : vector<8x16xf32>
    %51 = tpu.matmul %7, %50, %cst_33 {dimension_numbers = #tpu.dot_dimension_numbers<[1], [0], [0], [1], [0, 0, 1, 1], [], []>} : vector<8x12xbf16>, vector<12x16xbf16>, vector<8x16xf32> -> vector<8x16xf32>
    %52 = arith.addf %49, %51 : vector<8x16xf32>
    %53 = vector.extract_strided_slice %44 {offsets = [0, 1], sizes = [12, 16], strides = [1, 1]} : vector<12x17xbf16> to vector<12x16xbf16>
    %cst_34 = arith.constant dense<0.000000e+00> : vector<8x16xf32>
    %54 = tpu.matmul %9, %53, %cst_34 {dimension_numbers = #tpu.dot_dimension_numbers<[1], [0], [0], [1], [0, 0, 1, 1], [], []>} : vector<8x12xbf16>, vector<12x16xbf16>, vector<8x16xf32> -> vector<8x16xf32>
    %55 = arith.addf %52, %54 : vector<8x16xf32>
    %56 = vector.broadcast %1 : vector<8x1xf32> to vector<8x16xf32>
    %57 = arith.addf %55, %56 : vector<8x16xf32>
    %cst_35 = arith.constant 0.000000e+00 : f32
    %58 = vector.broadcast %cst_35 : f32 to vector<8x16xf32>
    %59 = arith.maximumf %57, %58 : vector<8x16xf32>
    %60 = arith.truncf %59 : vector<8x16xf32> to vector<8x16xbf16>
    %c0_36 = arith.constant 0 : index
    %c1_37 = arith.constant 1 : index
    %c0_38 = arith.constant 0 : index
    %c0_39 = arith.constant 0 : index
    %61 = vector.load %arg5[%c0_36, %c1_37, %c0_38, %c0_39] : memref<1x8x8x16xbf16, #tpu.memory_space<vmem>>, vector<1x1x8x16xbf16>
    %62 = vector.shape_cast %61 : vector<1x1x8x16xbf16> to vector<8x16xbf16>
    %63 = vector.shape_cast %60 : vector<8x16xbf16> to vector<1x1x8x16xbf16>
    tpu.vector_store %arg5[%c0_36, %c1_37, %c0_38, %c0_39], %63 {strides = array<i32>} : memref<1x8x8x16xbf16, #tpu.memory_space<vmem>>, vector<1x1x8x16xbf16>,
    %c2_i32_40 = arith.constant 2 : i32
    %64 = arith.addi %0, %c2_i32_40 : i32
    %c2_i32_41 = arith.constant 2 : i32
    %65 = arith.addi %64, %c2_i32_41 : i32
    %c1_i32_42 = arith.constant 1 : i32
    %66 = arith.subi %65, %c1_i32_42 : i32
    %c0_43 = arith.constant 0 : index
    %67 = arith.index_cast %66 : i32 to index
    %c0_44 = arith.constant 0 : index
    %c0_45 = arith.constant 0 : index
    %68 = vector.load %arg2[%c0_43, %67, %c0_44, %c0_45] : memref<1x17x12x17xbf16, #tpu.memory_space<vmem>>, vector<1x1x12x17xbf16>
    %69 = vector.shape_cast %68 : vector<1x1x12x17xbf16> to vector<12x17xbf16>
    %70 = vector.extract_strided_slice %44 {offsets = [0, 0], sizes = [12, 16], strides = [1, 1]} : vector<12x17xbf16> to vector<12x16xbf16>
    %cst_46 = arith.constant dense<0.000000e+00> : vector<8x16xf32>
    %71 = tpu.matmul %3, %70, %cst_46 {dimension_numbers = #tpu.dot_dimension_numbers<[1], [0], [0], [1], [0, 0, 1, 1], [], []>} : vector<8x12xbf16>, vector<12x16xbf16>, vector<8x16xf32> -> vector<8x16xf32>
    %72 = vector.extract_strided_slice %44 {offsets = [0, 1], sizes = [12, 16], strides = [1, 1]} : vector<12x17xbf16> to vector<12x16xbf16>
    %cst_47 = arith.constant dense<0.000000e+00> : vector<8x16xf32>
    %73 = tpu.matmul %5, %72, %cst_47 {dimension_numbers = #tpu.dot_dimension_numbers<[1], [0], [0], [1], [0, 0, 1, 1], [], []>} : vector<8x12xbf16>, vector<12x16xbf16>, vector<8x16xf32> -> vector<8x16xf32>
    %74 = arith.addf %71, %73 : vector<8x16xf32>
    %75 = vector.extract_strided_slice %69 {offsets = [0, 0], sizes = [12, 16], strides = [1, 1]} : vector<12x17xbf16> to vector<12x16xbf16>
    %cst_48 = arith.constant dense<0.000000e+00> : vector<8x16xf32>
    %76 = tpu.matmul %7, %75, %cst_48 {dimension_numbers = #tpu.dot_dimension_numbers<[1], [0], [0], [1], [0, 0, 1, 1], [], []>} : vector<8x12xbf16>, vector<12x16xbf16>, vector<8x16xf32> -> vector<8x16xf32>
    %77 = arith.addf %74, %76 : vector<8x16xf32>
    %78 = vector.extract_strided_slice %69 {offsets = [0, 1], sizes = [12, 16], strides = [1, 1]} : vector<12x17xbf16> to vector<12x16xbf16>
    %cst_49 = arith.constant dense<0.000000e+00> : vector<8x16xf32>
    %79 = tpu.matmul %9, %78, %cst_49 {dimension_numbers = #tpu.dot_dimension_numbers<[1], [0], [0], [1], [0, 0, 1, 1], [], []>} : vector<8x12xbf16>, vector<12x16xbf16>, vector<8x16xf32> -> vector<8x16xf32>
    %80 = arith.addf %77, %79 : vector<8x16xf32>
    %81 = vector.broadcast %1 : vector<8x1xf32> to vector<8x16xf32>
    %82 = arith.addf %80, %81 : vector<8x16xf32>
    %cst_50 = arith.constant 0.000000e+00 : f32
    %83 = vector.broadcast %cst_50 : f32 to vector<8x16xf32>
    %84 = arith.maximumf %82, %83 : vector<8x16xf32>
    %85 = arith.truncf %84 : vector<8x16xf32> to vector<8x16xbf16>
    %c0_51 = arith.constant 0 : index
    %c2_52 = arith.constant 2 : index
    %c0_53 = arith.constant 0 : index
    %c0_54 = arith.constant 0 : index
    %86 = vector.load %arg5[%c0_51, %c2_52, %c0_53, %c0_54] : memref<1x8x8x16xbf16, #tpu.memory_space<vmem>>, vector<1x1x8x16xbf16>
    %87 = vector.shape_cast %86 : vector<1x1x8x16xbf16> to vector<8x16xbf16>
    %88 = vector.shape_cast %85 : vector<8x16xbf16> to vector<1x1x8x16xbf16>
    tpu.vector_store %arg5[%c0_51, %c2_52, %c0_53, %c0_54], %88 {strides = array<i32>} : memref<1x8x8x16xbf16, #tpu.memory_space<vmem>>, vector<1x1x8x16xbf16>,
    %c3_i32 = arith.constant 3 : i32
    %89 = arith.addi %0, %c3_i32 : i32
    %c2_i32_55 = arith.constant 2 : i32
    %90 = arith.addi %89, %c2_i32_55 : i32
    %c1_i32_56 = arith.constant 1 : i32
    %91 = arith.subi %90, %c1_i32_56 : i32
    %c0_57 = arith.constant 0 : index
    %92 = arith.index_cast %91 : i32 to index
    %c0_58 = arith.constant 0 : index
    %c0_59 = arith.constant 0 : index
    %93 = vector.load %arg2[%c0_57, %92, %c0_58, %c0_59] : memref<1x17x12x17xbf16, #tpu.memory_space<vmem>>, vector<1x1x12x17xbf16>
    %94 = vector.shape_cast %93 : vector<1x1x12x17xbf16> to vector<12x17xbf16>
    %95 = vector.extract_strided_slice %69 {offsets = [0, 0], sizes = [12, 16], strides = [1, 1]} : vector<12x17xbf16> to vector<12x16xbf16>
    %cst_60 = arith.constant dense<0.000000e+00> : vector<8x16xf32>
    %96 = tpu.matmul %3, %95, %cst_60 {dimension_numbers = #tpu.dot_dimension_numbers<[1], [0], [0], [1], [0, 0, 1, 1], [], []>} : vector<8x12xbf16>, vector<12x16xbf16>, vector<8x16xf32> -> vector<8x16xf32>
    %97 = vector.extract_strided_slice %69 {offsets = [0, 1], sizes = [12, 16], strides = [1, 1]} : vector<12x17xbf16> to vector<12x16xbf16>
    %cst_61 = arith.constant dense<0.000000e+00> : vector<8x16xf32>
    %98 = tpu.matmul %5, %97, %cst_61 {dimension_numbers = #tpu.dot_dimension_numbers<[1], [0], [0], [1], [0, 0, 1, 1], [], []>} : vector<8x12xbf16>, vector<12x16xbf16>, vector<8x16xf32> -> vector<8x16xf32>
    %99 = arith.addf %96, %98 : vector<8x16xf32>
    %100 = vector.extract_strided_slice %94 {offsets = [0, 0], sizes = [12, 16], strides = [1, 1]} : vector<12x17xbf16> to vector<12x16xbf16>
    %cst_62 = arith.constant dense<0.000000e+00> : vector<8x16xf32>
    %101 = tpu.matmul %7, %100, %cst_62 {dimension_numbers = #tpu.dot_dimension_numbers<[1], [0], [0], [1], [0, 0, 1, 1], [], []>} : vector<8x12xbf16>, vector<12x16xbf16>, vector<8x16xf32> -> vector<8x16xf32>
    %102 = arith.addf %99, %101 : vector<8x16xf32>
    %103 = vector.extract_strided_slice %94 {offsets = [0, 1], sizes = [12, 16], strides = [1, 1]} : vector<12x17xbf16> to vector<12x16xbf16>
    %cst_63 = arith.constant dense<0.000000e+00> : vector<8x16xf32>
    %104 = tpu.matmul %9, %103, %cst_63 {dimension_numbers = #tpu.dot_dimension_numbers<[1], [0], [0], [1], [0, 0, 1, 1], [], []>} : vector<8x12xbf16>, vector<12x16xbf16>, vector<8x16xf32> -> vector<8x16xf32>
    %105 = arith.addf %102, %104 : vector<8x16xf32>
    %106 = vector.broadcast %1 : vector<8x1xf32> to vector<8x16xf32>
    %107 = arith.addf %105, %106 : vector<8x16xf32>
    %cst_64 = arith.constant 0.000000e+00 : f32
    %108 = vector.broadcast %cst_64 : f32 to vector<8x16xf32>
    %109 = arith.maximumf %107, %108 : vector<8x16xf32>
    %110 = arith.truncf %109 : vector<8x16xf32> to vector<8x16xbf16>
    %c0_65 = arith.constant 0 : index
    %c3_66 = arith.constant 3 : index
    %c0_67 = arith.constant 0 : index
    %c0_68 = arith.constant 0 : index
    %111 = vector.load %arg5[%c0_65, %c3_66, %c0_67, %c0_68] : memref<1x8x8x16xbf16, #tpu.memory_space<vmem>>, vector<1x1x8x16xbf16>
    %112 = vector.shape_cast %111 : vector<1x1x8x16xbf16> to vector<8x16xbf16>
    %113 = vector.shape_cast %110 : vector<8x16xbf16> to vector<1x1x8x16xbf16>
    tpu.vector_store %arg5[%c0_65, %c3_66, %c0_67, %c0_68], %113 {strides = array<i32>} : memref<1x8x8x16xbf16, #tpu.memory_space<vmem>>, vector<1x1x8x16xbf16>,
    %c4_i32 = arith.constant 4 : i32
    %114 = arith.addi %0, %c4_i32 : i32
    %c2_i32_69 = arith.constant 2 : i32
    %115 = arith.addi %114, %c2_i32_69 : i32
    %c1_i32_70 = arith.constant 1 : i32
    %116 = arith.subi %115, %c1_i32_70 : i32
    %c0_71 = arith.constant 0 : index
    %117 = arith.index_cast %116 : i32 to index
    %c0_72 = arith.constant 0 : index
    %c0_73 = arith.constant 0 : index
    %118 = vector.load %arg2[%c0_71, %117, %c0_72, %c0_73] : memref<1x17x12x17xbf16, #tpu.memory_space<vmem>>, vector<1x1x12x17xbf16>
    %119 = vector.shape_cast %118 : vector<1x1x12x17xbf16> to vector<12x17xbf16>
    %120 = vector.extract_strided_slice %94 {offsets = [0, 0], sizes = [12, 16], strides = [1, 1]} : vector<12x17xbf16> to vector<12x16xbf16>
    %cst_74 = arith.constant dense<0.000000e+00> : vector<8x16xf32>
    %121 = tpu.matmul %3, %120, %cst_74 {dimension_numbers = #tpu.dot_dimension_numbers<[1], [0], [0], [1], [0, 0, 1, 1], [], []>} : vector<8x12xbf16>, vector<12x16xbf16>, vector<8x16xf32> -> vector<8x16xf32>
    %122 = vector.extract_strided_slice %94 {offsets = [0, 1], sizes = [12, 16], strides = [1, 1]} : vector<12x17xbf16> to vector<12x16xbf16>
    %cst_75 = arith.constant dense<0.000000e+00> : vector<8x16xf32>
    %123 = tpu.matmul %5, %122, %cst_75 {dimension_numbers = #tpu.dot_dimension_numbers<[1], [0], [0], [1], [0, 0, 1, 1], [], []>} : vector<8x12xbf16>, vector<12x16xbf16>, vector<8x16xf32> -> vector<8x16xf32>
    %124 = arith.addf %121, %123 : vector<8x16xf32>
    %125 = vector.extract_strided_slice %119 {offsets = [0, 0], sizes = [12, 16], strides = [1, 1]} : vector<12x17xbf16> to vector<12x16xbf16>
    %cst_76 = arith.constant dense<0.000000e+00> : vector<8x16xf32>
    %126 = tpu.matmul %7, %125, %cst_76 {dimension_numbers = #tpu.dot_dimension_numbers<[1], [0], [0], [1], [0, 0, 1, 1], [], []>} : vector<8x12xbf16>, vector<12x16xbf16>, vector<8x16xf32> -> vector<8x16xf32>
    %127 = arith.addf %124, %126 : vector<8x16xf32>
    %128 = vector.extract_strided_slice %119 {offsets = [0, 1], sizes = [12, 16], strides = [1, 1]} : vector<12x17xbf16> to vector<12x16xbf16>
    %cst_77 = arith.constant dense<0.000000e+00> : vector<8x16xf32>
    %129 = tpu.matmul %9, %128, %cst_77 {dimension_numbers = #tpu.dot_dimension_numbers<[1], [0], [0], [1], [0, 0, 1, 1], [], []>} : vector<8x12xbf16>, vector<12x16xbf16>, vector<8x16xf32> -> vector<8x16xf32>
    %130 = arith.addf %127, %129 : vector<8x16xf32>
    %131 = vector.broadcast %1 : vector<8x1xf32> to vector<8x16xf32>
    %132 = arith.addf %130, %131 : vector<8x16xf32>
    %cst_78 = arith.constant 0.000000e+00 : f32
    %133 = vector.broadcast %cst_78 : f32 to vector<8x16xf32>
    %134 = arith.maximumf %132, %133 : vector<8x16xf32>
    %135 = arith.truncf %134 : vector<8x16xf32> to vector<8x16xbf16>
    %c0_79 = arith.constant 0 : index
    %c4 = arith.constant 4 : index
    %c0_80 = arith.constant 0 : index
    %c0_81 = arith.constant 0 : index
    %136 = vector.load %arg5[%c0_79, %c4, %c0_80, %c0_81] : memref<1x8x8x16xbf16, #tpu.memory_space<vmem>>, vector<1x1x8x16xbf16>
    %137 = vector.shape_cast %136 : vector<1x1x8x16xbf16> to vector<8x16xbf16>
    %138 = vector.shape_cast %135 : vector<8x16xbf16> to vector<1x1x8x16xbf16>
    tpu.vector_store %arg5[%c0_79, %c4, %c0_80, %c0_81], %138 {strides = array<i32>} : memref<1x8x8x16xbf16, #tpu.memory_space<vmem>>, vector<1x1x8x16xbf16>,
    %c5_i32 = arith.constant 5 : i32
    %139 = arith.addi %0, %c5_i32 : i32
    %c2_i32_82 = arith.constant 2 : i32
    %140 = arith.addi %139, %c2_i32_82 : i32
    %c1_i32_83 = arith.constant 1 : i32
    %141 = arith.subi %140, %c1_i32_83 : i32
    %c0_84 = arith.constant 0 : index
    %142 = arith.index_cast %141 : i32 to index
    %c0_85 = arith.constant 0 : index
    %c0_86 = arith.constant 0 : index
    %143 = vector.load %arg2[%c0_84, %142, %c0_85, %c0_86] : memref<1x17x12x17xbf16, #tpu.memory_space<vmem>>, vector<1x1x12x17xbf16>
    %144 = vector.shape_cast %143 : vector<1x1x12x17xbf16> to vector<12x17xbf16>
    %145 = vector.extract_strided_slice %119 {offsets = [0, 0], sizes = [12, 16], strides = [1, 1]} : vector<12x17xbf16> to vector<12x16xbf16>
    %cst_87 = arith.constant dense<0.000000e+00> : vector<8x16xf32>
    %146 = tpu.matmul %3, %145, %cst_87 {dimension_numbers = #tpu.dot_dimension_numbers<[1], [0], [0], [1], [0, 0, 1, 1], [], []>} : vector<8x12xbf16>, vector<12x16xbf16>, vector<8x16xf32> -> vector<8x16xf32>
    %147 = vector.extract_strided_slice %119 {offsets = [0, 1], sizes = [12, 16], strides = [1, 1]} : vector<12x17xbf16> to vector<12x16xbf16>
    %cst_88 = arith.constant dense<0.000000e+00> : vector<8x16xf32>
    %148 = tpu.matmul %5, %147, %cst_88 {dimension_numbers = #tpu.dot_dimension_numbers<[1], [0], [0], [1], [0, 0, 1, 1], [], []>} : vector<8x12xbf16>, vector<12x16xbf16>, vector<8x16xf32> -> vector<8x16xf32>
    %149 = arith.addf %146, %148 : vector<8x16xf32>
    %150 = vector.extract_strided_slice %144 {offsets = [0, 0], sizes = [12, 16], strides = [1, 1]} : vector<12x17xbf16> to vector<12x16xbf16>
    %cst_89 = arith.constant dense<0.000000e+00> : vector<8x16xf32>
    %151 = tpu.matmul %7, %150, %cst_89 {dimension_numbers = #tpu.dot_dimension_numbers<[1], [0], [0], [1], [0, 0, 1, 1], [], []>} : vector<8x12xbf16>, vector<12x16xbf16>, vector<8x16xf32> -> vector<8x16xf32>
    %152 = arith.addf %149, %151 : vector<8x16xf32>
    %153 = vector.extract_strided_slice %144 {offsets = [0, 1], sizes = [12, 16], strides = [1, 1]} : vector<12x17xbf16> to vector<12x16xbf16>
    %cst_90 = arith.constant dense<0.000000e+00> : vector<8x16xf32>
    %154 = tpu.matmul %9, %153, %cst_90 {dimension_numbers = #tpu.dot_dimension_numbers<[1], [0], [0], [1], [0, 0, 1, 1], [], []>} : vector<8x12xbf16>, vector<12x16xbf16>, vector<8x16xf32> -> vector<8x16xf32>
    %155 = arith.addf %152, %154 : vector<8x16xf32>
    %156 = vector.broadcast %1 : vector<8x1xf32> to vector<8x16xf32>
    %157 = arith.addf %155, %156 : vector<8x16xf32>
    %cst_91 = arith.constant 0.000000e+00 : f32
    %158 = vector.broadcast %cst_91 : f32 to vector<8x16xf32>
    %159 = arith.maximumf %157, %158 : vector<8x16xf32>
    %160 = arith.truncf %159 : vector<8x16xf32> to vector<8x16xbf16>
    %c0_92 = arith.constant 0 : index
    %c5 = arith.constant 5 : index
    %c0_93 = arith.constant 0 : index
    %c0_94 = arith.constant 0 : index
    %161 = vector.load %arg5[%c0_92, %c5, %c0_93, %c0_94] : memref<1x8x8x16xbf16, #tpu.memory_space<vmem>>, vector<1x1x8x16xbf16>
    %162 = vector.shape_cast %161 : vector<1x1x8x16xbf16> to vector<8x16xbf16>
    %163 = vector.shape_cast %160 : vector<8x16xbf16> to vector<1x1x8x16xbf16>
    tpu.vector_store %arg5[%c0_92, %c5, %c0_93, %c0_94], %163 {strides = array<i32>} : memref<1x8x8x16xbf16, #tpu.memory_space<vmem>>, vector<1x1x8x16xbf16>,
    %c6_i32 = arith.constant 6 : i32
    %164 = arith.addi %0, %c6_i32 : i32
    %c2_i32_95 = arith.constant 2 : i32
    %165 = arith.addi %164, %c2_i32_95 : i32
    %c1_i32_96 = arith.constant 1 : i32
    %166 = arith.subi %165, %c1_i32_96 : i32
    %c0_97 = arith.constant 0 : index
    %167 = arith.index_cast %166 : i32 to index
    %c0_98 = arith.constant 0 : index
    %c0_99 = arith.constant 0 : index
    %168 = vector.load %arg2[%c0_97, %167, %c0_98, %c0_99] : memref<1x17x12x17xbf16, #tpu.memory_space<vmem>>, vector<1x1x12x17xbf16>
    %169 = vector.shape_cast %168 : vector<1x1x12x17xbf16> to vector<12x17xbf16>
    %170 = vector.extract_strided_slice %144 {offsets = [0, 0], sizes = [12, 16], strides = [1, 1]} : vector<12x17xbf16> to vector<12x16xbf16>
    %cst_100 = arith.constant dense<0.000000e+00> : vector<8x16xf32>
    %171 = tpu.matmul %3, %170, %cst_100 {dimension_numbers = #tpu.dot_dimension_numbers<[1], [0], [0], [1], [0, 0, 1, 1], [], []>} : vector<8x12xbf16>, vector<12x16xbf16>, vector<8x16xf32> -> vector<8x16xf32>
    %172 = vector.extract_strided_slice %144 {offsets = [0, 1], sizes = [12, 16], strides = [1, 1]} : vector<12x17xbf16> to vector<12x16xbf16>
    %cst_101 = arith.constant dense<0.000000e+00> : vector<8x16xf32>
    %173 = tpu.matmul %5, %172, %cst_101 {dimension_numbers = #tpu.dot_dimension_numbers<[1], [0], [0], [1], [0, 0, 1, 1], [], []>} : vector<8x12xbf16>, vector<12x16xbf16>, vector<8x16xf32> -> vector<8x16xf32>
    %174 = arith.addf %171, %173 : vector<8x16xf32>
    %175 = vector.extract_strided_slice %169 {offsets = [0, 0], sizes = [12, 16], strides = [1, 1]} : vector<12x17xbf16> to vector<12x16xbf16>
    %cst_102 = arith.constant dense<0.000000e+00> : vector<8x16xf32>
    %176 = tpu.matmul %7, %175, %cst_102 {dimension_numbers = #tpu.dot_dimension_numbers<[1], [0], [0], [1], [0, 0, 1, 1], [], []>} : vector<8x12xbf16>, vector<12x16xbf16>, vector<8x16xf32> -> vector<8x16xf32>
    %177 = arith.addf %174, %176 : vector<8x16xf32>
    %178 = vector.extract_strided_slice %169 {offsets = [0, 1], sizes = [12, 16], strides = [1, 1]} : vector<12x17xbf16> to vector<12x16xbf16>
    %cst_103 = arith.constant dense<0.000000e+00> : vector<8x16xf32>
    %179 = tpu.matmul %9, %178, %cst_103 {dimension_numbers = #tpu.dot_dimension_numbers<[1], [0], [0], [1], [0, 0, 1, 1], [], []>} : vector<8x12xbf16>, vector<12x16xbf16>, vector<8x16xf32> -> vector<8x16xf32>
    %180 = arith.addf %177, %179 : vector<8x16xf32>
    %181 = vector.broadcast %1 : vector<8x1xf32> to vector<8x16xf32>
    %182 = arith.addf %180, %181 : vector<8x16xf32>
    %cst_104 = arith.constant 0.000000e+00 : f32
    %183 = vector.broadcast %cst_104 : f32 to vector<8x16xf32>
    %184 = arith.maximumf %182, %183 : vector<8x16xf32>
    %185 = arith.truncf %184 : vector<8x16xf32> to vector<8x16xbf16>
    %c0_105 = arith.constant 0 : index
    %c6 = arith.constant 6 : index
    %c0_106 = arith.constant 0 : index
    %c0_107 = arith.constant 0 : index
    %186 = vector.load %arg5[%c0_105, %c6, %c0_106, %c0_107] : memref<1x8x8x16xbf16, #tpu.memory_space<vmem>>, vector<1x1x8x16xbf16>
    %187 = vector.shape_cast %186 : vector<1x1x8x16xbf16> to vector<8x16xbf16>
    %188 = vector.shape_cast %185 : vector<8x16xbf16> to vector<1x1x8x16xbf16>
    tpu.vector_store %arg5[%c0_105, %c6, %c0_106, %c0_107], %188 {strides = array<i32>} : memref<1x8x8x16xbf16, #tpu.memory_space<vmem>>, vector<1x1x8x16xbf16>,
    %c7_i32 = arith.constant 7 : i32
    %189 = arith.addi %0, %c7_i32 : i32
    %c2_i32_108 = arith.constant 2 : i32
    %190 = arith.addi %189, %c2_i32_108 : i32
    %c1_i32_109 = arith.constant 1 : i32
    %191 = arith.subi %190, %c1_i32_109 : i32
    %c0_110 = arith.constant 0 : index
    %192 = arith.index_cast %191 : i32 to index
    %c0_111 = arith.constant 0 : index
    %c0_112 = arith.constant 0 : index
    %193 = vector.load %arg2[%c0_110, %192, %c0_111, %c0_112] : memref<1x17x12x17xbf16, #tpu.memory_space<vmem>>, vector<1x1x12x17xbf16>
    %194 = vector.shape_cast %193 : vector<1x1x12x17xbf16> to vector<12x17xbf16>
    %195 = vector.extract_strided_slice %169 {offsets = [0, 0], sizes = [12, 16], strides = [1, 1]} : vector<12x17xbf16> to vector<12x16xbf16>
    %cst_113 = arith.constant dense<0.000000e+00> : vector<8x16xf32>
    %196 = tpu.matmul %3, %195, %cst_113 {dimension_numbers = #tpu.dot_dimension_numbers<[1], [0], [0], [1], [0, 0, 1, 1], [], []>} : vector<8x12xbf16>, vector<12x16xbf16>, vector<8x16xf32> -> vector<8x16xf32>
    %197 = vector.extract_strided_slice %169 {offsets = [0, 1], sizes = [12, 16], strides = [1, 1]} : vector<12x17xbf16> to vector<12x16xbf16>
    %cst_114 = arith.constant dense<0.000000e+00> : vector<8x16xf32>
    %198 = tpu.matmul %5, %197, %cst_114 {dimension_numbers = #tpu.dot_dimension_numbers<[1], [0], [0], [1], [0, 0, 1, 1], [], []>} : vector<8x12xbf16>, vector<12x16xbf16>, vector<8x16xf32> -> vector<8x16xf32>
    %199 = arith.addf %196, %198 : vector<8x16xf32>
    %200 = vector.extract_strided_slice %194 {offsets = [0, 0], sizes = [12, 16], strides = [1, 1]} : vector<12x17xbf16> to vector<12x16xbf16>
    %cst_115 = arith.constant dense<0.000000e+00> : vector<8x16xf32>
    %201 = tpu.matmul %7, %200, %cst_115 {dimension_numbers = #tpu.dot_dimension_numbers<[1], [0], [0], [1], [0, 0, 1, 1], [], []>} : vector<8x12xbf16>, vector<12x16xbf16>, vector<8x16xf32> -> vector<8x16xf32>
    %202 = arith.addf %199, %201 : vector<8x16xf32>
    %203 = vector.extract_strided_slice %194 {offsets = [0, 1], sizes = [12, 16], strides = [1, 1]} : vector<12x17xbf16> to vector<12x16xbf16>
    %cst_116 = arith.constant dense<0.000000e+00> : vector<8x16xf32>
    %204 = tpu.matmul %9, %203, %cst_116 {dimension_numbers = #tpu.dot_dimension_numbers<[1], [0], [0], [1], [0, 0, 1, 1], [], []>} : vector<8x12xbf16>, vector<12x16xbf16>, vector<8x16xf32> -> vector<8x16xf32>
    %205 = arith.addf %202, %204 : vector<8x16xf32>
    %206 = vector.broadcast %1 : vector<8x1xf32> to vector<8x16xf32>
    %207 = arith.addf %205, %206 : vector<8x16xf32>
    %cst_117 = arith.constant 0.000000e+00 : f32
    %208 = vector.broadcast %cst_117 : f32 to vector<8x16xf32>
    %209 = arith.maximumf %207, %208 : vector<8x16xf32>
    %210 = arith.truncf %209 : vector<8x16xf32> to vector<8x16xbf16>
    %c0_118 = arith.constant 0 : index
    %c7 = arith.constant 7 : index
    %c0_119 = arith.constant 0 : index
    %c0_120 = arith.constant 0 : index
    %211 = vector.load %arg5[%c0_118, %c7, %c0_119, %c0_120] : memref<1x8x8x16xbf16, #tpu.memory_space<vmem>>, vector<1x1x8x16xbf16>
    %212 = vector.shape_cast %211 : vector<1x1x8x16xbf16> to vector<8x16xbf16>
    %213 = vector.shape_cast %210 : vector<8x16xbf16> to vector<1x1x8x16xbf16>
    tpu.vector_store %arg5[%c0_118, %c7, %c0_119, %c0_120], %213 {strides = array<i32>} : memref<1x8x8x16xbf16, #tpu.memory_space<vmem>>, vector<1x1x8x16xbf16>,
    return
  }
  func.func @transform_0(%arg0: i32, %arg1: i32) -> (i32, i32, i32, i32) {
    %c0_i32 = arith.constant 0 : i32
    %c0_i32_0 = arith.constant 0 : i32
    %c0_i32_1 = arith.constant 0 : i32
    %c0_i32_2 = arith.constant 0 : i32
    return %arg0, %c0_i32, %c0_i32_0, %c0_i32_1 : i32, i32, i32, i32
  }
  func.func @transform_1(%arg0: i32, %arg1: i32) -> (i32, i32, i32) {
    %c0_i32 = arith.constant 0 : i32
    %c0_i32_0 = arith.constant 0 : i32
    %c0_i32_1 = arith.constant 0 : i32
    %c0_i32_2 = arith.constant 0 : i32
    return %c0_i32, %c0_i32_0, %c0_i32_1 : i32, i32, i32
  }
  func.func @transform_2(%arg0: i32, %arg1: i32) -> (i32, i32) {
    %c0_i32 = arith.constant 0 : i32
    %c0_i32_0 = arith.constant 0 : i32
    %c0_i32_1 = arith.constant 0 : i32
    return %c0_i32, %c0_i32_0 : i32, i32
  }
  func.func @transform_3(%arg0: i32, %arg1: i32) -> (i32, i32, i32, i32) {
    %c0_i32 = arith.constant 0 : i32
    %c0_i32_0 = arith.constant 0 : i32
    %c0_i32_1 = arith.constant 0 : i32
    return %arg0, %arg1, %c0_i32, %c0_i32_0 : i32, i32, i32, i32
  }
}

</mosaic_0001>

<llo_original>
// kernel: tpu_custom_call.1
$region0: #{tpu_custom_call.1}
  #allocation0 [shape = 'u32[]', space=smem, size = 0x4, offset = 0x4, fixed_abs, tag = 'smem constant byte address 0x4 - core index']
  #allocation1 [shape = 'u32[144,128]{1,0:T(1,128)}', space=vmem, size = 0x12000, scoped, tag = 'internal scratch']
  %s0 = inlined_call_operand.vmem [shape: bf16[2,17,12,17], index: 0, kind: input, shape index: {}]
  %s1 = inlined_call_operand.vmem [shape: bf16[4,8,12], index: 1, kind: input, shape index: {}]
  %s2 = inlined_call_operand.vmem [shape: f32[8,1], index: 2, kind: input, shape index: {}]
  %s3 = inlined_call_operand.hbm [shape: bf16[2,16,8,16], index: 3, kind: output, shape index: {}]
  %s4 = sld [smem:[#allocation0]]
  $region45: #{tpu_custom_call.1} parent=0
    _
  %s6 = ssub.s32 1, %s4
  %s7 = scalar_select 0, %s6, %s4
  $region1: #{tpu_custom_call.1} parent=0
    #allocation2 [shape = 'u8[32768]{0}', space=vmem, size = 0x8000, scoped, tag = 'output window, operand 0']
    #allocation3 [shape = 's32[2]{0}', space=sflag, size = 0x8, scoped, tag = 'scoped memory for tpu_custom_call.1']
    %8 = vsyncpa [#allocation3], 0
    %s9 = scalar_lea.sflag [#allocation3], 1
    %10 = vsyncpa %s9, 0
    loop: start=0, step=1, limit=6
    $region2: #{tpu_custom_call.1} parent=1 // loop_pre_header
      _
    $region3: #{tpu_custom_call.1} parent=1 // loop_header
      %s12 = sphi 0, %s16
      %p13 = scmp.ge.s32.totalorder %s12, 6
      %s19 = sphi 0, %s31
      %s20 = sphi 0, %s27
      %s21 = sphi 0, %s19
      %s22 = sphi 0, %s20
      %s23 = sphi 0, %s21
      %s24 = sphi 0, %s22
      %s34 = sphi 0, %s36
      %s37 = sphi 0, %s34
      %s38 = sphi 0, %s37
      %s54 = sphi 0, %s38
      %s58 = sphi 0, %s58
      %s60 = sphi 0, %s58
      %s61 = sphi 0, %s60
      %s75 = sphi 0, %s61
      %s79 = sphi 0, %s79
      %s81 = sphi 0, %s79
      %s82 = sphi 0, %s81
      %s96 = sphi 0, %s82
      %s104 = sphi 0, %s106
      %s107 = sphi 0, %s104
      %s108 = sphi 0, %s107
      %s124 = sphi 0, %s108
    $region4: #{tpu_custom_call.1} parent=1 // loop_header_branch
      %15 = sbr.rel (%p13) target = $region8
    $region5: #{tpu_custom_call.1} parent=1 // loop_body
      %s17 = ssub.s32 %s12, 1
      %s18 = ssub.s32 %s12, 2
      %s25 = sadd.s32 1, %s20
      %p26 = scmp.ge.s32.totalorder %s25, 2
      %s27 = scalar_select %p26, 0, %s25
      %s28 = sadd.s32 1, %s19
      %s29 = scalar_select %p26, %s28, %s19
      %p30 = scmp.ge.s32.totalorder %s29, 2
      %s31 = scalar_select %p30, 0, %s29
      %s32 = ssub.s32 %s19, %s31
      %p33 = scmp.eq.s32.totalorder %s32, 0
      %s35 = sadd.s32 %s34, 1
      %s36 = scalar_select %p33, %s34, %s35
      %p39 = pneg %p33
      %p40 = scmp.eq.s32.totalorder %s12, 3
      %p41 = por %p39, %p40
      %p42 = scmp.ne.s32.totalorder %s34, %s37
      %p43 = scmp.eq.s32.totalorder %s12, 0
      %p44 = por %p42, %p43
      %p45 = scmp.ne.s32.totalorder %s34, %s37
      %p46 = scmp.eq.s32.totalorder %s17, 3
      %p47 = por %p45, %p46
      %p48 = scmp.ne.s32.totalorder %s37, %s38
      %p49 = scmp.eq.s32.totalorder %s17, 0
      %p50 = por %p48, %p49
      %p51 = scmp.ne.s32.totalorder %s37, %s38
      %p52 = scmp.eq.s32.totalorder %s18, 3
      %p53 = por %p51, %p52
      %p55 = scmp.ne.s32.totalorder %s38, %s54
      %p56 = scmp.eq.s32.totalorder %s18, 0
      %p57 = por %p55, %p56
      %s59 = sadd.s32 %s58, 1
      %p62 = scmp.eq.s32.totalorder %s12, 3
      %p63 = scmp.ne.s32.totalorder %s58, %s60
      %p64 = scmp.eq.s32.totalorder %s12, 0
      %p65 = por %p63, %p64
      %p66 = scmp.ne.s32.totalorder %s58, %s60
      %p67 = scmp.eq.s32.totalorder %s17, 3
      %p68 = por %p66, %p67
      %p69 = scmp.ne.s32.totalorder %s60, %s61
      %p70 = scmp.eq.s32.totalorder %s17, 0
      %p71 = por %p69, %p70
      %p72 = scmp.ne.s32.totalorder %s60, %s61
      %p73 = scmp.eq.s32.totalorder %s18, 3
      %p74 = por %p72, %p73
      %p76 = scmp.ne.s32.totalorder %s61, %s75
      %p77 = scmp.eq.s32.totalorder %s18, 0
      %p78 = por %p76, %p77
      %s80 = sadd.s32 %s79, 1
      %p83 = scmp.eq.s32.totalorder %s12, 3
      %p84 = scmp.ne.s32.totalorder %s79, %s81
      %p85 = scmp.eq.s32.totalorder %s12, 0
      %p86 = por %p84, %p85
      %p87 = scmp.ne.s32.totalorder %s79, %s81
      %p88 = scmp.eq.s32.totalorder %s17, 3
      %p89 = por %p87, %p88
      %p90 = scmp.ne.s32.totalorder %s81, %s82
      %p91 = scmp.eq.s32.totalorder %s17, 0
      %p92 = por %p90, %p91
      %p93 = scmp.ne.s32.totalorder %s81, %s82
      %p94 = scmp.eq.s32.totalorder %s18, 3
      %p95 = por %p93, %p94
      %p97 = scmp.ne.s32.totalorder %s82, %s96
      %p98 = scmp.eq.s32.totalorder %s18, 0
      %p99 = por %p97, %p98
      %s100 = ssub.s32 %s19, %s31
      %s101 = ssub.s32 %s20, %s27
      %s102 = sor.u32 %s100, %s101
      %p103 = scmp.eq.s32.totalorder %s102, 0
      %s105 = sadd.s32 %s104, 1
      %s106 = scalar_select %p103, %s104, %s105
      %p109 = pneg %p103
      %p110 = scmp.eq.s32.totalorder %s12, 3
      %p111 = por %p109, %p110
      %p112 = scmp.ne.s32.totalorder %s104, %s107
      %p113 = scmp.eq.s32.totalorder %s12, 0
      %p114 = por %p112, %p113
      %p115 = scmp.ne.s32.totalorder %s104, %s107
      %p116 = scmp.eq.s32.totalorder %s17, 3
      %p117 = por %p115, %p116
      %p118 = scmp.ne.s32.totalorder %s107, %s108
      %p119 = scmp.eq.s32.totalorder %s17, 0
      %p120 = por %p118, %p119
      %p121 = scmp.ne.s32.totalorder %s107, %s108
      %p122 = scmp.eq.s32.totalorder %s18, 3
      %p123 = por %p121, %p122
      %p125 = scmp.ne.s32.totalorder %s108, %s124
      %p126 = scmp.eq.s32.totalorder %s18, 0
      %p127 = por %p125, %p126
      %p128 = scmp.le.s32.totalorder 1, %s12
      %p129 = scmp.lt.s32.totalorder %s12, 5
      %p130 = pnand %p128, %p129
      %p131 = pneg %p130
      // Predicated region
      $region9: #{tpu_custom_call.1} parent=5 // pred_check
        _
      $region10: #{tpu_custom_call.1} parent=5 // pred_check_branch
        %133 = sbr.rel (%p130) target = $region12
      $region11: #{tpu_custom_call.1} parent=5 // pred_region
        %s134 = ssub.s32 %s12, 1
        // Predicated region
        $region13: #{tpu_custom_call.1} parent=11 // pred_check
          %p135 = pneg %p71
        $region14: #{tpu_custom_call.1} parent=11 // pred_check_branch
          %137 = sbr.rel (%p135) target = $region16
        $region15: #{tpu_custom_call.1} parent=11 // pred_region
          _
        $region16: #{tpu_custom_call.1} parent=11 // pred_fallthru
          _
        // Predicated region
        $region17: #{tpu_custom_call.1} parent=11 // pred_check
          %p138 = pneg %p92
        $region18: #{tpu_custom_call.1} parent=11 // pred_check_branch
          %140 = sbr.rel (%p138) target = $region20
        $region19: #{tpu_custom_call.1} parent=11 // pred_region
          _
        $region20: #{tpu_custom_call.1} parent=11 // pred_fallthru
          _
      $region12: #{tpu_custom_call.1} parent=5 // pred_fallthru
        _
      %p141 = scmp.lt.s32.totalorder %s12, 4
      // Predicated region
      $region21: #{tpu_custom_call.1} parent=5 // pred_check
        %p142 = pneg %p141
      $region22: #{tpu_custom_call.1} parent=5 // pred_check_branch
        %144 = sbr.rel (%p142) target = $region24
      $region23: #{tpu_custom_call.1} parent=5 // pred_region
        // Predicated region
        $region25: #{tpu_custom_call.1} parent=23 // pred_check
          %p145 = pneg %p44
        $region26: #{tpu_custom_call.1} parent=23 // pred_check_branch
          %147 = sbr.rel (%p145) target = $region28
        $region27: #{tpu_custom_call.1} parent=23 // pred_region
          %p148 = scmp.lt.s32.totalorder %s19, 1
          %s149 = scalar_select %p148, %s19, 1
          %s150 = smul.addr %s149, 34
          %s151 = smul.addr %s150, 4
          %s152 = scalar_lea.vmem %s0, %s151
        $region28: #{tpu_custom_call.1} parent=23 // pred_fallthru
          _
      $region24: #{tpu_custom_call.1} parent=5 // pred_fallthru
        _
      %p153 = scmp.le.s32.totalorder 1, %s12
      %p154 = scmp.lt.s32.totalorder %s12, 5
      %p155 = pnand %p153, %p154
      %p156 = pneg %p155
      // Predicated region
      $region29: #{tpu_custom_call.1} parent=5 // pred_check
        _
      $region30: #{tpu_custom_call.1} parent=5 // pred_check_branch
        %158 = sbr.rel (%p155) target = $region32
      $region31: #{tpu_custom_call.1} parent=5 // pred_region
        %s159 = ssub.s32 %s12, 1
        %p160 = scmp.lt.s32.totalorder %s21, 1
        %s161 = scalar_select %p160, %s21, 1
        %s162 = smul.addr %s161, 34
        %s163 = smul.addr %s162, 4
        %s164 = scalar_lea.vmem %s0, %s163
        %p165 = pneg %p50
        %p166 = pneg %p47
        %p167 = pneg %p71
        %p168 = pneg %p68
        %p169 = pneg %p92
        %p170 = pneg %p89
        %p171 = pneg %p120
        %p172 = pneg %p117
        %s173 = sand.u32 %s107, 1
        %s174 = scalar_lea.sflag [#allocation3], %s173
        %s175 = sand.u32 %s107, 1
        %s176 = smul.addr %s175, 32
        %s177 = scalar_lea.vmem [#allocation2], %s176
        %p178 = scmp.lt.s32.totalorder %s21, 1
        %s179 = scalar_select %p178, %s21, 1
        %s180 = smul.addr %s179, 34
        %s181 = smul.addr %s180, 4
        %s182 = scalar_lea.vmem %s0, %s181
        %s183 = smul.u32 8, %s22
        %s185 = smul.u32 %s22, 8
        %v186 = vld [vmem:[%s2] sm:$0xff]
        %v187 = vld [vmem:[%s1] sm:$0xf]
        %s188 = scalar_lea.vmem %s1, 4
        %v189 = vld [vmem:[%s188] sm:$0xf]
        %s190 = scalar_lea.vmem %s1, 8
        %v191 = vld [vmem:[%s190] sm:$0xf]
        %s192 = scalar_lea.vmem %s1, 12
        %v193 = vld [vmem:[%s192] sm:$0xf]
        %s194 = smul.u32 %s185, 2
        %s195 = smul.addr %s194, 4
        %s196 = scalar_lea.vmem %s182, %s195
        %v197 = vld [vmem:[%s196] sm:$0xf]
        %v198 = vld [vmem:[%s196 + $0x4] sm:$0x3]
        %s199 = sadd.s32 %s185, 1
        %s200 = smul.u32 %s199, 2
        %s201 = smul.addr %s200, 4
        %s202 = scalar_lea.vmem %s182, %s201
        %v203 = vld [vmem:[%s202] sm:$0xf]
        %v204 = vld [vmem:[%s202 + $0x4] sm:$0x3]
        %v207 = vunpack.c.l.b16 %v197
        %v208 = vunpack.c.l.b16 %v198
        %v209 = vpack.c.b16 %v208, %v207
        %210 = vrot.lane.b32.xlu0 %v209, 127
        %v211 = vpop.permute.xlu0 %210
        %vm212 = vcmask 97280
        %v214 = vsel %vm212, %v189, 0
        %vm216 = vcmask 1045504
        %v218 = vsel %vm216, %v211, 0
        %220 = vmatprep.subr.bf16.mxu0 0
        %221 = vmatpush1.bf16.msra.mxu0 0
        %222 = vmatprep.subr.bf16.mxu0 0
        %223 = vmatpush1.bf16.msra.mxu0 0
        %224 = vmatprep.subr.bf16.mxu0 0
        %225 = vmatpush1.bf16.msra.mxu0 0
        %226 = vmatprep.subr.bf16.mxu0 0
        %227 = vmatpush1.bf16.msra.mxu0 0
        %228 = vmatprep.subr.bf16.mxu0 0
        %229 = vmatpush1.bf16.msra.mxu0 0
        %230 = vmatprep.subr.bf16.mxu0 0
        %231 = vmatpush1.bf16.msra.mxu0 0
        %232 = vmatprep.subr.bf16.mxu0 0
        %233 = vmatpush1.bf16.msra.mxu0 0
        %234 = vmatprep.subr.bf16.mxu0 0
        %235 = vmatpush1.bf16.msra.mxu0 %v218
        %236 = vmatprep.subr.bf16.mxu0 0
        %237 = vmatpush2.bf16.msra.mxu0 0
        %238 = vmatprep.subr.bf16.mxu0 0
        %239 = vmatpush2.bf16.msra.mxu0 0
        %240 = vmatprep.subr.bf16.mxu0 0
        %241 = vmatpush2.bf16.msra.mxu0 0
        %242 = vmatprep.subr.bf16.mxu0 0
        %243 = vmatpush2.bf16.msra.mxu0 0
        %244 = vmatprep.subr.bf16.mxu0 0
        %245 = vmatpush2.bf16.msra.mxu0 0
        %246 = vmatprep.subr.bf16.mxu0 0
        %247 = vmatpush2.bf16.msra.mxu0 0
        %248 = vmatprep.subr.bf16.mxu0 0
        %249 = vmatpush2.bf16.msra.mxu0 0
        %250 = vmatprep.subr.bf16.mxu0 0
        %251 = vmatpush2.bf16.msra.mxu0 0
        %252 = vmatprep.mubr.bf16.mxu0 0
        %253 = vmatmul.mubr.bf16.gmra.mxu0 %v214
        %v254 = vpop.f32.mrf.mxu0
        %v255 = vadd.f32 0.0, %v254
        %v256 = vpop.f32.mrf.mxu0
        %v257 = vpop.f32.mrf.mxu0
        %v258 = vpop.f32.mrf.mxu0
        %259 = vdwg.mxu0
        %v261 = vsel %vm212, %v187, 0
        %v264 = vsel %vm216, %v209, 0
        %266 = vmatprep.subr.bf16.mxu0 0
        %267 = vmatpush1.bf16.msra.mxu0 0
        %268 = vmatprep.subr.bf16.mxu0 0
        %269 = vmatpush1.bf16.msra.mxu0 0
        %270 = vmatprep.subr.bf16.mxu0 0
        %271 = vmatpush1.bf16.msra.mxu0 0
        %272 = vmatprep.subr.bf16.mxu0 0
        %273 = vmatpush1.bf16.msra.mxu0 0
        %274 = vmatprep.subr.bf16.mxu0 0
        %275 = vmatpush1.bf16.msra.mxu0 0
        %276 = vmatprep.subr.bf16.mxu0 0
        %277 = vmatpush1.bf16.msra.mxu0 0
        %278 = vmatprep.subr.bf16.mxu0 0
        %279 = vmatpush1.bf16.msra.mxu0 0
        %280 = vmatprep.subr.bf16.mxu0 0
        %281 = vmatpush1.bf16.msra.mxu0 %v264
        %282 = vmatprep.subr.bf16.mxu0 0
        %283 = vmatpush2.bf16.msra.mxu0 0
        %284 = vmatprep.subr.bf16.mxu0 0
        %285 = vmatpush2.bf16.msra.mxu0 0
        %286 = vmatprep.subr.bf16.mxu0 0
        %287 = vmatpush2.bf16.msra.mxu0 0
        %288 = vmatprep.subr.bf16.mxu0 0
        %289 = vmatpush2.bf16.msra.mxu0 0
        %290 = vmatprep.subr.bf16.mxu0 0
        %291 = vmatpush2.bf16.msra.mxu0 0
        %292 = vmatprep.subr.bf16.mxu0 0
        %293 = vmatpush2.bf16.msra.mxu0 0
        %294 = vmatprep.subr.bf16.mxu0 0
        %295 = vmatpush2.bf16.msra.mxu0 0
        %296 = vmatprep.subr.bf16.mxu0 0
        %297 = vmatpush2.bf16.msra.mxu0 0
        %298 = vmatprep.mubr.bf16.mxu0 0
        %299 = vmatmul.mubr.bf16.gmra.mxu0 %v261
        %v300 = vpop.f32.mrf.mxu0
        %v301 = vadd.f32 %v255, %v300
        %v302 = vpop.f32.mrf.mxu0
        %v303 = vpop.f32.mrf.mxu0
        %v304 = vpop.f32.mrf.mxu0
        %305 = vdwg.mxu0
        %v308 = vunpack.c.l.b16 %v203
        %v309 = vunpack.c.l.b16 %v204
        %v310 = vpack.c.b16 %v309, %v308
        %v312 = vsel %vm212, %v191, 0
        %v315 = vsel %vm216, %v310, 0
        %317 = vmatprep.subr.bf16.mxu0 0
        %318 = vmatpush1.bf16.msra.mxu0 0
        %319 = vmatprep.subr.bf16.mxu0 0
        %320 = vmatpush1.bf16.msra.mxu0 0
        %321 = vmatprep.subr.bf16.mxu0 0
        %322 = vmatpush1.bf16.msra.mxu0 0
        %323 = vmatprep.subr.bf16.mxu0 0
        %324 = vmatpush1.bf16.msra.mxu0 0
        %325 = vmatprep.subr.bf16.mxu0 0
        %326 = vmatpush1.bf16.msra.mxu0 0
        %327 = vmatprep.subr.bf16.mxu0 0
        %328 = vmatpush1.bf16.msra.mxu0 0
        %329 = vmatprep.subr.bf16.mxu0 0
        %330 = vmatpush1.bf16.msra.mxu0 0
        %331 = vmatprep.subr.bf16.mxu0 0
        %332 = vmatpush1.bf16.msra.mxu0 %v315
        %333 = vmatprep.subr.bf16.mxu0 0
        %334 = vmatpush2.bf16.msra.mxu0 0
        %335 = vmatprep.subr.bf16.mxu0 0
        %336 = vmatpush2.bf16.msra.mxu0 0
        %337 = vmatprep.subr.bf16.mxu0 0
        %338 = vmatpush2.bf16.msra.mxu0 0
        %339 = vmatprep.subr.bf16.mxu0 0
        %340 = vmatpush2.bf16.msra.mxu0 0
        %341 = vmatprep.subr.bf16.mxu0 0
        %342 = vmatpush2.bf16.msra.mxu0 0
        %343 = vmatprep.subr.bf16.mxu0 0
        %344 = vmatpush2.bf16.msra.mxu0 0
        %345 = vmatprep.subr.bf16.mxu0 0
        %346 = vmatpush2.bf16.msra.mxu0 0
        %347 = vmatprep.subr.bf16.mxu0 0
        %348 = vmatpush2.bf16.msra.mxu0 0
        %349 = vmatprep.mubr.bf16.mxu0 0
        %350 = vmatmul.mubr.bf16.gmra.mxu0 %v312
        %v351 = vpop.f32.mrf.mxu0
        %v352 = vadd.f32 0.0, %v351
        %v353 = vpop.f32.mrf.mxu0
        %v354 = vpop.f32.mrf.mxu0
        %v355 = vpop.f32.mrf.mxu0
        %356 = vdwg.mxu0
        %v357 = vadd.f32 %v301, %v352
        %358 = vrot.lane.b32.xlu0 %v310, 127
        %v359 = vpop.permute.xlu0 %358
        %v361 = vsel %vm212, %v193, 0
        %v364 = vsel %vm216, %v359, 0
        %366 = vmatprep.subr.bf16.mxu0 0
        %367 = vmatpush1.bf16.msra.mxu0 0
        %368 = vmatprep.subr.bf16.mxu0 0
        %369 = vmatpush1.bf16.msra.mxu0 0
        %370 = vmatprep.subr.bf16.mxu0 0
        %371 = vmatpush1.bf16.msra.mxu0 0
        %372 = vmatprep.subr.bf16.mxu0 0
        %373 = vmatpush1.bf16.msra.mxu0 0
        %374 = vmatprep.subr.bf16.mxu0 0
        %375 = vmatpush1.bf16.msra.mxu0 0
        %376 = vmatprep.subr.bf16.mxu0 0
        %377 = vmatpush1.bf16.msra.mxu0 0
        %378 = vmatprep.subr.bf16.mxu0 0
        %379 = vmatpush1.bf16.msra.mxu0 0
        %380 = vmatprep.subr.bf16.mxu0 0
        %381 = vmatpush1.bf16.msra.mxu0 %v364
        %382 = vmatprep.subr.bf16.mxu0 0
        %383 = vmatpush2.bf16.msra.mxu0 0
        %384 = vmatprep.subr.bf16.mxu0 0
        %385 = vmatpush2.bf16.msra.mxu0 0
        %386 = vmatprep.subr.bf16.mxu0 0
        %387 = vmatpush2.bf16.msra.mxu0 0
        %388 = vmatprep.subr.bf16.mxu0 0
        %389 = vmatpush2.bf16.msra.mxu0 0
        %390 = vmatprep.subr.bf16.mxu0 0
        %391 = vmatpush2.bf16.msra.mxu0 0
        %392 = vmatprep.subr.bf16.mxu0 0
        %393 = vmatpush2.bf16.msra.mxu0 0
        %394 = vmatprep.subr.bf16.mxu0 0
        %395 = vmatpush2.bf16.msra.mxu0 0
        %396 = vmatprep.subr.bf16.mxu0 0
        %397 = vmatpush2.bf16.msra.mxu0 0
        %398 = vmatprep.mubr.bf16.mxu0 0
        %399 = vmatmul.mubr.bf16.gmra.mxu0 %v361
        %v400 = vpop.f32.mrf.mxu0
        %v401 = vadd.f32 0.0, %v400
        %v402 = vpop.f32.mrf.mxu0
        %v403 = vpop.f32.mrf.mxu0
        %v404 = vpop.f32.mrf.mxu0
        %405 = vdwg.mxu0
        %v406 = vadd.f32 %v357, %v401
        %408 = vset.pattern.permute.xlu0 0
        %409 = vperm.xlu0 %408, %v186
        %v410 = vpop.permute.xlu0 %409
        %v412 = vadd.f32 %v406, %v410
        %v413 = vmax.f32 %v412, 0.0
        %v414 = vpack.c.bf16 %v413, %v413
        %vm415 = vcmask 125952
        %416 = vst.msk [vmem:[%s177] sm:$0xf] %vm415, %v414
        %s417 = sadd.s32 %s185, 2
        %s418 = smul.u32 %s417, 2
        %s419 = smul.addr %s418, 4
        %s420 = scalar_lea.vmem %s182, %s419
        %v421 = vld [vmem:[%s420] sm:$0xf]
        %v422 = vld [vmem:[%s420 + $0x4] sm:$0x3]
        %423 = vmatprep.subr.bf16.mxu0 0
        %424 = vmatpush1.bf16.msra.mxu0 0
        %425 = vmatprep.subr.bf16.mxu0 0
        %426 = vmatpush1.bf16.msra.mxu0 0
        %427 = vmatprep.subr.bf16.mxu0 0
        %428 = vmatpush1.bf16.msra.mxu0 0
        %429 = vmatprep.subr.bf16.mxu0 0
        %430 = vmatpush1.bf16.msra.mxu0 0
        %431 = vmatprep.subr.bf16.mxu0 0
        %432 = vmatpush1.bf16.msra.mxu0 0
        %433 = vmatprep.subr.bf16.mxu0 0
        %434 = vmatpush1.bf16.msra.mxu0 0
        %435 = vmatprep.subr.bf16.mxu0 0
        %436 = vmatpush1.bf16.msra.mxu0 0
        %437 = vmatprep.subr.bf16.mxu0 0
        %438 = vmatpush1.bf16.msra.mxu0 %v364
        %439 = vmatprep.subr.bf16.mxu0 0
        %440 = vmatpush2.bf16.msra.mxu0 0
        %441 = vmatprep.subr.bf16.mxu0 0
        %442 = vmatpush2.bf16.msra.mxu0 0
        %443 = vmatprep.subr.bf16.mxu0 0
        %444 = vmatpush2.bf16.msra.mxu0 0
        %445 = vmatprep.subr.bf16.mxu0 0
        %446 = vmatpush2.bf16.msra.mxu0 0
        %447 = vmatprep.subr.bf16.mxu0 0
        %448 = vmatpush2.bf16.msra.mxu0 0
        %449 = vmatprep.subr.bf16.mxu0 0
        %450 = vmatpush2.bf16.msra.mxu0 0
        %451 = vmatprep.subr.bf16.mxu0 0
        %452 = vmatpush2.bf16.msra.mxu0 0
        %453 = vmatprep.subr.bf16.mxu0 0
        %454 = vmatpush2.bf16.msra.mxu0 0
        %455 = vmatprep.mubr.bf16.mxu0 0
        %456 = vmatmul.mubr.bf16.gmra.mxu0 %v214
        %v457 = vpop.f32.mrf.mxu0
        %v458 = vadd.f32 0.0, %v457
        %v459 = vpop.f32.mrf.mxu0
        %v460 = vpop.f32.mrf.mxu0
        %v461 = vpop.f32.mrf.mxu0
        %462 = vdwg.mxu0
        %463 = vmatprep.subr.bf16.mxu0 0
        %464 = vmatpush1.bf16.msra.mxu0 0
        %465 = vmatprep.subr.bf16.mxu0 0
        %466 = vmatpush1.bf16.msra.mxu0 0
        %467 = vmatprep.subr.bf16.mxu0 0
        %468 = vmatpush1.bf16.msra.mxu0 0
        %469 = vmatprep.subr.bf16.mxu0 0
        %470 = vmatpush1.bf16.msra.mxu0 0
        %471 = vmatprep.subr.bf16.mxu0 0
        %472 = vmatpush1.bf16.msra.mxu0 0
        %473 = vmatprep.subr.bf16.mxu0 0
        %474 = vmatpush1.bf16.msra.mxu0 0
        %475 = vmatprep.subr.bf16.mxu0 0
        %476 = vmatpush1.bf16.msra.mxu0 0
        %477 = vmatprep.subr.bf16.mxu0 0
        %478 = vmatpush1.bf16.msra.mxu0 %v315
        %479 = vmatprep.subr.bf16.mxu0 0
        %480 = vmatpush2.bf16.msra.mxu0 0
        %481 = vmatprep.subr.bf16.mxu0 0
        %482 = vmatpush2.bf16.msra.mxu0 0
        %483 = vmatprep.subr.bf16.mxu0 0
        %484 = vmatpush2.bf16.msra.mxu0 0
        %485 = vmatprep.subr.bf16.mxu0 0
        %486 = vmatpush2.bf16.msra.mxu0 0
        %487 = vmatprep.subr.bf16.mxu0 0
        %488 = vmatpush2.bf16.msra.mxu0 0
        %489 = vmatprep.subr.bf16.mxu0 0
        %490 = vmatpush2.bf16.msra.mxu0 0
        %491 = vmatprep.subr.bf16.mxu0 0
        %492 = vmatpush2.bf16.msra.mxu0 0
        %493 = vmatprep.subr.bf16.mxu0 0
        %494 = vmatpush2.bf16.msra.mxu0 0
        %495 = vmatprep.mubr.bf16.mxu0 0
        %496 = vmatmul.mubr.bf16.gmra.mxu0 %v261
        %v497 = vpop.f32.mrf.mxu0
        %v498 = vadd.f32 %v458, %v497
        %v499 = vpop.f32.mrf.mxu0
        %v500 = vpop.f32.mrf.mxu0
        %v501 = vpop.f32.mrf.mxu0
        %502 = vdwg.mxu0
        %v505 = vunpack.c.l.b16 %v421
        %v506 = vunpack.c.l.b16 %v422
        %v507 = vpack.c.b16 %v506, %v505
        %v509 = vsel %vm216, %v507, 0
        %511 = vmatprep.subr.bf16.mxu0 0
        %512 = vmatpush1.bf16.msra.mxu0 0
        %513 = vmatprep.subr.bf16.mxu0 0
        %514 = vmatpush1.bf16.msra.mxu0 0
        %515 = vmatprep.subr.bf16.mxu0 0
        %516 = vmatpush1.bf16.msra.mxu0 0
        %517 = vmatprep.subr.bf16.mxu0 0
        %518 = vmatpush1.bf16.msra.mxu0 0
        %519 = vmatprep.subr.bf16.mxu0 0
        %520 = vmatpush1.bf16.msra.mxu0 0
        %521 = vmatprep.subr.bf16.mxu0 0
        %522 = vmatpush1.bf16.msra.mxu0 0
        %523 = vmatprep.subr.bf16.mxu0 0
        %524 = vmatpush1.bf16.msra.mxu0 0
        %525 = vmatprep.subr.bf16.mxu0 0
        %526 = vmatpush1.bf16.msra.mxu0 %v509
        %527 = vmatprep.subr.bf16.mxu0 0
        %528 = vmatpush2.bf16.msra.mxu0 0
        %529 = vmatprep.subr.bf16.mxu0 0
        %530 = vmatpush2.bf16.msra.mxu0 0
        %531 = vmatprep.subr.bf16.mxu0 0
        %532 = vmatpush2.bf16.msra.mxu0 0
        %533 = vmatprep.subr.bf16.mxu0 0
        %534 = vmatpush2.bf16.msra.mxu0 0
        %535 = vmatprep.subr.bf16.mxu0 0
        %536 = vmatpush2.bf16.msra.mxu0 0
        %537 = vmatprep.subr.bf16.mxu0 0
        %538 = vmatpush2.bf16.msra.mxu0 0
        %539 = vmatprep.subr.bf16.mxu0 0
        %540 = vmatpush2.bf16.msra.mxu0 0
        %541 = vmatprep.subr.bf16.mxu0 0
        %542 = vmatpush2.bf16.msra.mxu0 0
        %543 = vmatprep.mubr.bf16.mxu0 0
        %544 = vmatmul.mubr.bf16.gmra.mxu0 %v312
        %v545 = vpop.f32.mrf.mxu0
        %v546 = vadd.f32 0.0, %v545
        %v547 = vpop.f32.mrf.mxu0
        %v548 = vpop.f32.mrf.mxu0
        %v549 = vpop.f32.mrf.mxu0
        %550 = vdwg.mxu0
        %v551 = vadd.f32 %v498, %v546
        %552 = vrot.lane.b32.xlu0 %v507, 127
        %v553 = vpop.permute.xlu0 %552
        %v555 = vsel %vm216, %v553, 0
        %557 = vmatprep.subr.bf16.mxu0 0
        %558 = vmatpush1.bf16.msra.mxu0 0
        %559 = vmatprep.subr.bf16.mxu0 0
        %560 = vmatpush1.bf16.msra.mxu0 0
        %561 = vmatprep.subr.bf16.mxu0 0
        %562 = vmatpush1.bf16.msra.mxu0 0
        %563 = vmatprep.subr.bf16.mxu0 0
        %564 = vmatpush1.bf16.msra.mxu0 0
        %565 = vmatprep.subr.bf16.mxu0 0
        %566 = vmatpush1.bf16.msra.mxu0 0
        %567 = vmatprep.subr.bf16.mxu0 0
        %568 = vmatpush1.bf16.msra.mxu0 0
        %569 = vmatprep.subr.bf16.mxu0 0
        %570 = vmatpush1.bf16.msra.mxu0 0
        %571 = vmatprep.subr.bf16.mxu0 0
        %572 = vmatpush1.bf16.msra.mxu0 %v555
        %573 = vmatprep.subr.bf16.mxu0 0
        %574 = vmatpush2.bf16.msra.mxu0 0
        %575 = vmatprep.subr.bf16.mxu0 0
        %576 = vmatpush2.bf16.msra.mxu0 0
        %577 = vmatprep.subr.bf16.mxu0 0
        %578 = vmatpush2.bf16.msra.mxu0 0
        %579 = vmatprep.subr.bf16.mxu0 0
        %580 = vmatpush2.bf16.msra.mxu0 0
        %581 = vmatprep.subr.bf16.mxu0 0
        %582 = vmatpush2.bf16.msra.mxu0 0
        %583 = vmatprep.subr.bf16.mxu0 0
        %584 = vmatpush2.bf16.msra.mxu0 0
        %585 = vmatprep.subr.bf16.mxu0 0
        %586 = vmatpush2.bf16.msra.mxu0 0
        %587 = vmatprep.subr.bf16.mxu0 0
        %588 = vmatpush2.bf16.msra.mxu0 0
        %589 = vmatprep.mubr.bf16.mxu0 0
        %590 = vmatmul.mubr.bf16.gmra.mxu0 %v361
        %v591 = vpop.f32.mrf.mxu0
        %v592 = vadd.f32 0.0, %v591
        %v593 = vpop.f32.mrf.mxu0
        %v594 = vpop.f32.mrf.mxu0
        %v595 = vpop.f32.mrf.mxu0
        %596 = vdwg.mxu0
        %v597 = vadd.f32 %v551, %v592
        %v598 = vadd.f32 %v597, %v410
        %v599 = vmax.f32 %v598, 0.0
        %v600 = vpack.c.bf16 %v599, %v599
        %s601 = scalar_lea.vmem %s177, 4 [#allocation2]
        %602 = vst.msk [vmem:[%s601] sm:$0xf] %vm415, %v600
        %s603 = sadd.s32 %s185, 3
        %s604 = smul.u32 %s603, 2
        %s605 = smul.addr %s604, 4
        %s606 = scalar_lea.vmem %s182, %s605
        %v607 = vld [vmem:[%s606] sm:$0xf]
        %v608 = vld [vmem:[%s606 + $0x4] sm:$0x3]
        %609 = vmatprep.subr.bf16.mxu0 0
        %610 = vmatpush1.bf16.msra.mxu0 0
        %611 = vmatprep.subr.bf16.mxu0 0
        %612 = vmatpush1.bf16.msra.mxu0 0
        %613 = vmatprep.subr.bf16.mxu0 0
        %614 = vmatpush1.bf16.msra.mxu0 0
        %615 = vmatprep.subr.bf16.mxu0 0
        %616 = vmatpush1.bf16.msra.mxu0 0
        %617 = vmatprep.subr.bf16.mxu0 0
        %618 = vmatpush1.bf16.msra.mxu0 0
        %619 = vmatprep.subr.bf16.mxu0 0
        %620 = vmatpush1.bf16.msra.mxu0 0
        %621 = vmatprep.subr.bf16.mxu0 0
        %622 = vmatpush1.bf16.msra.mxu0 0
        %623 = vmatprep.subr.bf16.mxu0 0
        %624 = vmatpush1.bf16.msra.mxu0 %v555
        %625 = vmatprep.subr.bf16.mxu0 0
        %626 = vmatpush2.bf16.msra.mxu0 0
        %627 = vmatprep.subr.bf16.mxu0 0
        %628 = vmatpush2.bf16.msra.mxu0 0
        %629 = vmatprep.subr.bf16.mxu0 0
        %630 = vmatpush2.bf16.msra.mxu0 0
        %631 = vmatprep.subr.bf16.mxu0 0
        %632 = vmatpush2.bf16.msra.mxu0 0
        %633 = vmatprep.subr.bf16.mxu0 0
        %634 = vmatpush2.bf16.msra.mxu0 0
        %635 = vmatprep.subr.bf16.mxu0 0
        %636 = vmatpush2.bf16.msra.mxu0 0
        %637 = vmatprep.subr.bf16.mxu0 0
        %638 = vmatpush2.bf16.msra.mxu0 0
        %639 = vmatprep.subr.bf16.mxu0 0
        %640 = vmatpush2.bf16.msra.mxu0 0
        %641 = vmatprep.mubr.bf16.mxu0 0
        %642 = vmatmul.mubr.bf16.gmra.mxu0 %v214
        %v643 = vpop.f32.mrf.mxu0
        %v644 = vadd.f32 0.0, %v643
        %v645 = vpop.f32.mrf.mxu0
        %v646 = vpop.f32.mrf.mxu0
        %v647 = vpop.f32.mrf.mxu0
        %648 = vdwg.mxu0
        %649 = vmatprep.subr.bf16.mxu0 0
        %650 = vmatpush1.bf16.msra.mxu0 0
        %651 = vmatprep.subr.bf16.mxu0 0
        %652 = vmatpush1.bf16.msra.mxu0 0
        %653 = vmatprep.subr.bf16.mxu0 0
        %654 = vmatpush1.bf16.msra.mxu0 0
        %655 = vmatprep.subr.bf16.mxu0 0
        %656 = vmatpush1.bf16.msra.mxu0 0
        %657 = vmatprep.subr.bf16.mxu0 0
        %658 = vmatpush1.bf16.msra.mxu0 0
        %659 = vmatprep.subr.bf16.mxu0 0
        %660 = vmatpush1.bf16.msra.mxu0 0
        %661 = vmatprep.subr.bf16.mxu0 0
        %662 = vmatpush1.bf16.msra.mxu0 0
        %663 = vmatprep.subr.bf16.mxu0 0
        %664 = vmatpush1.bf16.msra.mxu0 %v509
        %665 = vmatprep.subr.bf16.mxu0 0
        %666 = vmatpush2.bf16.msra.mxu0 0
        %667 = vmatprep.subr.bf16.mxu0 0
        %668 = vmatpush2.bf16.msra.mxu0 0
        %669 = vmatprep.subr.bf16.mxu0 0
        %670 = vmatpush2.bf16.msra.mxu0 0
        %671 = vmatprep.subr.bf16.mxu0 0
        %672 = vmatpush2.bf16.msra.mxu0 0
        %673 = vmatprep.subr.bf16.mxu0 0
        %674 = vmatpush2.bf16.msra.mxu0 0
        %675 = vmatprep.subr.bf16.mxu0 0
        %676 = vmatpush2.bf16.msra.mxu0 0
        %677 = vmatprep.subr.bf16.mxu0 0
        %678 = vmatpush2.bf16.msra.mxu0 0
        %679 = vmatprep.subr.bf16.mxu0 0
        %680 = vmatpush2.bf16.msra.mxu0 0
        %681 = vmatprep.mubr.bf16.mxu0 0
        %682 = vmatmul.mubr.bf16.gmra.mxu0 %v261
        %v683 = vpop.f32.mrf.mxu0
        %v684 = vadd.f32 %v644, %v683
        %v685 = vpop.f32.mrf.mxu0
        %v686 = vpop.f32.mrf.mxu0
        %v687 = vpop.f32.mrf.mxu0
        %688 = vdwg.mxu0
        %v691 = vunpack.c.l.b16 %v607
        %v692 = vunpack.c.l.b16 %v608
        %v693 = vpack.c.b16 %v692, %v691
        %v695 = vsel %vm216, %v693, 0
        %697 = vmatprep.subr.bf16.mxu0 0
        %698 = vmatpush1.bf16.msra.mxu0 0
        %699 = vmatprep.subr.bf16.mxu0 0
        %700 = vmatpush1.bf16.msra.mxu0 0
        %701 = vmatprep.subr.bf16.mxu0 0
        %702 = vmatpush1.bf16.msra.mxu0 0
        %703 = vmatprep.subr.bf16.mxu0 0
        %704 = vmatpush1.bf16.msra.mxu0 0
        %705 = vmatprep.subr.bf16.mxu0 0
        %706 = vmatpush1.bf16.msra.mxu0 0
        %707 = vmatprep.subr.bf16.mxu0 0
        %708 = vmatpush1.bf16.msra.mxu0 0
        %709 = vmatprep.subr.bf16.mxu0 0
        %710 = vmatpush1.bf16.msra.mxu0 0
        %711 = vmatprep.subr.bf16.mxu0 0
        %712 = vmatpush1.bf16.msra.mxu0 %v695
        %713 = vmatprep.subr.bf16.mxu0 0
        %714 = vmatpush2.bf16.msra.mxu0 0
        %715 = vmatprep.subr.bf16.mxu0 0
        %716 = vmatpush2.bf16.msra.mxu0 0
        %717 = vmatprep.subr.bf16.mxu0 0
        %718 = vmatpush2.bf16.msra.mxu0 0
        %719 = vmatprep.subr.bf16.mxu0 0
        %720 = vmatpush2.bf16.msra.mxu0 0
        %721 = vmatprep.subr.bf16.mxu0 0
        %722 = vmatpush2.bf16.msra.mxu0 0
        %723 = vmatprep.subr.bf16.mxu0 0
        %724 = vmatpush2.bf16.msra.mxu0 0
        %725 = vmatprep.subr.bf16.mxu0 0
        %726 = vmatpush2.bf16.msra.mxu0 0
        %727 = vmatprep.subr.bf16.mxu0 0
        %728 = vmatpush2.bf16.msra.mxu0 0
        %729 = vmatprep.mubr.bf16.mxu0 0
        %730 = vmatmul.mubr.bf16.gmra.mxu0 %v312
        %v731 = vpop.f32.mrf.mxu0
        %v732 = vadd.f32 0.0, %v731
        %v733 = vpop.f32.mrf.mxu0
        %v734 = vpop.f32.mrf.mxu0
        %v735 = vpop.f32.mrf.mxu0
        %736 = vdwg.mxu0
        %v737 = vadd.f32 %v684, %v732
        %738 = vrot.lane.b32.xlu0 %v693, 127
        %v739 = vpop.permute.xlu0 %738
        %v741 = vsel %vm216, %v739, 0
        %743 = vmatprep.subr.bf16.mxu0 0
        %744 = vmatpush1.bf16.msra.mxu0 0
        %745 = vmatprep.subr.bf16.mxu0 0
        %746 = vmatpush1.bf16.msra.mxu0 0
        %747 = vmatprep.subr.bf16.mxu0 0
        %748 = vmatpush1.bf16.msra.mxu0 0
        %749 = vmatprep.subr.bf16.mxu0 0
        %750 = vmatpush1.bf16.msra.mxu0 0
        %751 = vmatprep.subr.bf16.mxu0 0
        %752 = vmatpush1.bf16.msra.mxu0 0
        %753 = vmatprep.subr.bf16.mxu0 0
        %754 = vmatpush1.bf16.msra.mxu0 0
        %755 = vmatprep.subr.bf16.mxu0 0
        %756 = vmatpush1.bf16.msra.mxu0 0
        %757 = vmatprep.subr.bf16.mxu0 0
        %758 = vmatpush1.bf16.msra.mxu0 %v741
        %759 = vmatprep.subr.bf16.mxu0 0
        %760 = vmatpush2.bf16.msra.mxu0 0
        %761 = vmatprep.subr.bf16.mxu0 0
        %762 = vmatpush2.bf16.msra.mxu0 0
        %763 = vmatprep.subr.bf16.mxu0 0
        %764 = vmatpush2.bf16.msra.mxu0 0
        %765 = vmatprep.subr.bf16.mxu0 0
        %766 = vmatpush2.bf16.msra.mxu0 0
        %767 = vmatprep.subr.bf16.mxu0 0
        %768 = vmatpush2.bf16.msra.mxu0 0
        %769 = vmatprep.subr.bf16.mxu0 0
        %770 = vmatpush2.bf16.msra.mxu0 0
        %771 = vmatprep.subr.bf16.mxu0 0
        %772 = vmatpush2.bf16.msra.mxu0 0
        %773 = vmatprep.subr.bf16.mxu0 0
        %774 = vmatpush2.bf16.msra.mxu0 0
        %775 = vmatprep.mubr.bf16.mxu0 0
        %776 = vmatmul.mubr.bf16.gmra.mxu0 %v361
        %v777 = vpop.f32.mrf.mxu0
        %v778 = vadd.f32 0.0, %v777
        %v779 = vpop.f32.mrf.mxu0
        %v780 = vpop.f32.mrf.mxu0
        %v781 = vpop.f32.mrf.mxu0
        %782 = vdwg.mxu0
        %v783 = vadd.f32 %v737, %v778
        %v784 = vadd.f32 %v783, %v410
        %v785 = vmax.f32 %v784, 0.0
        %v786 = vpack.c.bf16 %v785, %v785
        %s787 = scalar_lea.vmem %s177, 8 [#allocation2]
        %788 = vst.msk [vmem:[%s787] sm:$0xf] %vm415, %v786
        %s789 = sadd.s32 %s185, 4
        %s790 = smul.u32 %s789, 2
        %s791 = smul.addr %s790, 4
        %s792 = scalar_lea.vmem %s182, %s791
        %v793 = vld [vmem:[%s792] sm:$0xf]
        %v794 = vld [vmem:[%s792 + $0x4] sm:$0x3]
        %795 = vmatprep.subr.bf16.mxu0 0
        %796 = vmatpush1.bf16.msra.mxu0 0
        %797 = vmatprep.subr.bf16.mxu0 0
        %798 = vmatpush1.bf16.msra.mxu0 0
        %799 = vmatprep.subr.bf16.mxu0 0
        %800 = vmatpush1.bf16.msra.mxu0 0
        %801 = vmatprep.subr.bf16.mxu0 0
        %802 = vmatpush1.bf16.msra.mxu0 0
        %803 = vmatprep.subr.bf16.mxu0 0
        %804 = vmatpush1.bf16.msra.mxu0 0
        %805 = vmatprep.subr.bf16.mxu0 0
        %806 = vmatpush1.bf16.msra.mxu0 0
        %807 = vmatprep.subr.bf16.mxu0 0
        %808 = vmatpush1.bf16.msra.mxu0 0
        %809 = vmatprep.subr.bf16.mxu0 0
        %810 = vmatpush1.bf16.msra.mxu0 %v741
        %811 = vmatprep.subr.bf16.mxu0 0
        %812 = vmatpush2.bf16.msra.mxu0 0
        %813 = vmatprep.subr.bf16.mxu0 0
        %814 = vmatpush2.bf16.msra.mxu0 0
        %815 = vmatprep.subr.bf16.mxu0 0
        %816 = vmatpush2.bf16.msra.mxu0 0
        %817 = vmatprep.subr.bf16.mxu0 0
        %818 = vmatpush2.bf16.msra.mxu0 0
        %819 = vmatprep.subr.bf16.mxu0 0
        %820 = vmatpush2.bf16.msra.mxu0 0
        %821 = vmatprep.subr.bf16.mxu0 0
        %822 = vmatpush2.bf16.msra.mxu0 0
        %823 = vmatprep.subr.bf16.mxu0 0
        %824 = vmatpush2.bf16.msra.mxu0 0
        %825 = vmatprep.subr.bf16.mxu0 0
        %826 = vmatpush2.bf16.msra.mxu0 0
        %827 = vmatprep.mubr.bf16.mxu0 0
        %828 = vmatmul.mubr.bf16.gmra.mxu0 %v214
        %v829 = vpop.f32.mrf.mxu0
        %v830 = vadd.f32 0.0, %v829
        %v831 = vpop.f32.mrf.mxu0
        %v832 = vpop.f32.mrf.mxu0
        %v833 = vpop.f32.mrf.mxu0
        %834 = vdwg.mxu0
        %835 = vmatprep.subr.bf16.mxu0 0
        %836 = vmatpush1.bf16.msra.mxu0 0
        %837 = vmatprep.subr.bf16.mxu0 0
        %838 = vmatpush1.bf16.msra.mxu0 0
        %839 = vmatprep.subr.bf16.mxu0 0
        %840 = vmatpush1.bf16.msra.mxu0 0
        %841 = vmatprep.subr.bf16.mxu0 0
        %842 = vmatpush1.bf16.msra.mxu0 0
        %843 = vmatprep.subr.bf16.mxu0 0
        %844 = vmatpush1.bf16.msra.mxu0 0
        %845 = vmatprep.subr.bf16.mxu0 0
        %846 = vmatpush1.bf16.msra.mxu0 0
        %847 = vmatprep.subr.bf16.mxu0 0
        %848 = vmatpush1.bf16.msra.mxu0 0
        %849 = vmatprep.subr.bf16.mxu0 0
        %850 = vmatpush1.bf16.msra.mxu0 %v695
        %851 = vmatprep.subr.bf16.mxu0 0
        %852 = vmatpush2.bf16.msra.mxu0 0
        %853 = vmatprep.subr.bf16.mxu0 0
        %854 = vmatpush2.bf16.msra.mxu0 0
        %855 = vmatprep.subr.bf16.mxu0 0
        %856 = vmatpush2.bf16.msra.mxu0 0
        %857 = vmatprep.subr.bf16.mxu0 0
        %858 = vmatpush2.bf16.msra.mxu0 0
        %859 = vmatprep.subr.bf16.mxu0 0
        %860 = vmatpush2.bf16.msra.mxu0 0
        %861 = vmatprep.subr.bf16.mxu0 0
        %862 = vmatpush2.bf16.msra.mxu0 0
        %863 = vmatprep.subr.bf16.mxu0 0
        %864 = vmatpush2.bf16.msra.mxu0 0
        %865 = vmatprep.subr.bf16.mxu0 0
        %866 = vmatpush2.bf16.msra.mxu0 0
        %867 = vmatprep.mubr.bf16.mxu0 0
        %868 = vmatmul.mubr.bf16.gmra.mxu0 %v261
        %v869 = vpop.f32.mrf.mxu0
        %v870 = vadd.f32 %v830, %v869
        %v871 = vpop.f32.mrf.mxu0
        %v872 = vpop.f32.mrf.mxu0
        %v873 = vpop.f32.mrf.mxu0
        %874 = vdwg.mxu0
        %v877 = vunpack.c.l.b16 %v793
        %v878 = vunpack.c.l.b16 %v794
        %v879 = vpack.c.b16 %v878, %v877
        %v881 = vsel %vm216, %v879, 0
        %883 = vmatprep.subr.bf16.mxu0 0
        %884 = vmatpush1.bf16.msra.mxu0 0
        %885 = vmatprep.subr.bf16.mxu0 0
        %886 = vmatpush1.bf16.msra.mxu0 0
        %887 = vmatprep.subr.bf16.mxu0 0
        %888 = vmatpush1.bf16.msra.mxu0 0
        %889 = vmatprep.subr.bf16.mxu0 0
        %890 = vmatpush1.bf16.msra.mxu0 0
        %891 = vmatprep.subr.bf16.mxu0 0
        %892 = vmatpush1.bf16.msra.mxu0 0
        %893 = vmatprep.subr.bf16.mxu0 0
        %894 = vmatpush1.bf16.msra.mxu0 0
        %895 = vmatprep.subr.bf16.mxu0 0
        %896 = vmatpush1.bf16.msra.mxu0 0
        %897 = vmatprep.subr.bf16.mxu0 0
        %898 = vmatpush1.bf16.msra.mxu0 %v881
        %899 = vmatprep.subr.bf16.mxu0 0
        %900 = vmatpush2.bf16.msra.mxu0 0
        %901 = vmatprep.subr.bf16.mxu0 0
        %902 = vmatpush2.bf16.msra.mxu0 0
        %903 = vmatprep.subr.bf16.mxu0 0
        %904 = vmatpush2.bf16.msra.mxu0 0
        %905 = vmatprep.subr.bf16.mxu0 0
        %906 = vmatpush2.bf16.msra.mxu0 0
        %907 = vmatprep.subr.bf16.mxu0 0
        %908 = vmatpush2.bf16.msra.mxu0 0
        %909 = vmatprep.subr.bf16.mxu0 0
        %910 = vmatpush2.bf16.msra.mxu0 0
        %911 = vmatprep.subr.bf16.mxu0 0
        %912 = vmatpush2.bf16.msra.mxu0 0
        %913 = vmatprep.subr.bf16.mxu0 0
        %914 = vmatpush2.bf16.msra.mxu0 0
        %915 = vmatprep.mubr.bf16.mxu0 0
        %916 = vmatmul.mubr.bf16.gmra.mxu0 %v312
        %v917 = vpop.f32.mrf.mxu0
        %v918 = vadd.f32 0.0, %v917
        %v919 = vpop.f32.mrf.mxu0
        %v920 = vpop.f32.mrf.mxu0
        %v921 = vpop.f32.mrf.mxu0
        %922 = vdwg.mxu0
        %v923 = vadd.f32 %v870, %v918
        %924 = vrot.lane.b32.xlu0 %v879, 127
        %v925 = vpop.permute.xlu0 %924
        %v927 = vsel %vm216, %v925, 0
        %929 = vmatprep.subr.bf16.mxu0 0
        %930 = vmatpush1.bf16.msra.mxu0 0
        %931 = vmatprep.subr.bf16.mxu0 0
        %932 = vmatpush1.bf16.msra.mxu0 0
        %933 = vmatprep.subr.bf16.mxu0 0
        %934 = vmatpush1.bf16.msra.mxu0 0
        %935 = vmatprep.subr.bf16.mxu0 0
        %936 = vmatpush1.bf16.msra.mxu0 0
        %937 = vmatprep.subr.bf16.mxu0 0
        %938 = vmatpush1.bf16.msra.mxu0 0
        %939 = vmatprep.subr.bf16.mxu0 0
        %940 = vmatpush1.bf16.msra.mxu0 0
        %941 = vmatprep.subr.bf16.mxu0 0
        %942 = vmatpush1.bf16.msra.mxu0 0
        %943 = vmatprep.subr.bf16.mxu0 0
        %944 = vmatpush1.bf16.msra.mxu0 %v927
        %945 = vmatprep.subr.bf16.mxu0 0
        %946 = vmatpush2.bf16.msra.mxu0 0
        %947 = vmatprep.subr.bf16.mxu0 0
        %948 = vmatpush2.bf16.msra.mxu0 0
        %949 = vmatprep.subr.bf16.mxu0 0
        %950 = vmatpush2.bf16.msra.mxu0 0
        %951 = vmatprep.subr.bf16.mxu0 0
        %952 = vmatpush2.bf16.msra.mxu0 0
        %953 = vmatprep.subr.bf16.mxu0 0
        %954 = vmatpush2.bf16.msra.mxu0 0
        %955 = vmatprep.subr.bf16.mxu0 0
        %956 = vmatpush2.bf16.msra.mxu0 0
        %957 = vmatprep.subr.bf16.mxu0 0
        %958 = vmatpush2.bf16.msra.mxu0 0
        %959 = vmatprep.subr.bf16.mxu0 0
        %960 = vmatpush2.bf16.msra.mxu0 0
        %961 = vmatprep.mubr.bf16.mxu0 0
        %962 = vmatmul.mubr.bf16.gmra.mxu0 %v361
        %v963 = vpop.f32.mrf.mxu0
        %v964 = vadd.f32 0.0, %v963
        %v965 = vpop.f32.mrf.mxu0
        %v966 = vpop.f32.mrf.mxu0
        %v967 = vpop.f32.mrf.mxu0
        %968 = vdwg.mxu0
        %v969 = vadd.f32 %v923, %v964
        %v970 = vadd.f32 %v969, %v410
        %v971 = vmax.f32 %v970, 0.0
        %v972 = vpack.c.bf16 %v971, %v971
        %s973 = scalar_lea.vmem %s177, 12 [#allocation2]
        %974 = vst.msk [vmem:[%s973] sm:$0xf] %vm415, %v972
        %s975 = sadd.s32 %s185, 5
        %s976 = smul.u32 %s975, 2
        %s977 = smul.addr %s976, 4
        %s978 = scalar_lea.vmem %s182, %s977
        %v979 = vld [vmem:[%s978] sm:$0xf]
        %v980 = vld [vmem:[%s978 + $0x4] sm:$0x3]
        %981 = vmatprep.subr.bf16.mxu0 0
        %982 = vmatpush1.bf16.msra.mxu0 0
        %983 = vmatprep.subr.bf16.mxu0 0
        %984 = vmatpush1.bf16.msra.mxu0 0
        %985 = vmatprep.subr.bf16.mxu0 0
        %986 = vmatpush1.bf16.msra.mxu0 0
        %987 = vmatprep.subr.bf16.mxu0 0
        %988 = vmatpush1.bf16.msra.mxu0 0
        %989 = vmatprep.subr.bf16.mxu0 0
        %990 = vmatpush1.bf16.msra.mxu0 0
        %991 = vmatprep.subr.bf16.mxu0 0
        %992 = vmatpush1.bf16.msra.mxu0 0
        %993 = vmatprep.subr.bf16.mxu0 0
        %994 = vmatpush1.bf16.msra.mxu0 0
        %995 = vmatprep.subr.bf16.mxu0 0
        %996 = vmatpush1.bf16.msra.mxu0 %v927
        %997 = vmatprep.subr.bf16.mxu0 0
        %998 = vmatpush2.bf16.msra.mxu0 0
        %999 = vmatprep.subr.bf16.mxu0 0
        %1000 = vmatpush2.bf16.msra.mxu0 0
        %1001 = vmatprep.subr.bf16.mxu0 0
        %1002 = vmatpush2.bf16.msra.mxu0 0
        %1003 = vmatprep.subr.bf16.mxu0 0
        %1004 = vmatpush2.bf16.msra.mxu0 0
        %1005 = vmatprep.subr.bf16.mxu0 0
        %1006 = vmatpush2.bf16.msra.mxu0 0
        %1007 = vmatprep.subr.bf16.mxu0 0
        %1008 = vmatpush2.bf16.msra.mxu0 0
        %1009 = vmatprep.subr.bf16.mxu0 0
        %1010 = vmatpush2.bf16.msra.mxu0 0
        %1011 = vmatprep.subr.bf16.mxu0 0
        %1012 = vmatpush2.bf16.msra.mxu0 0
        %1013 = vmatprep.mubr.bf16.mxu0 0
        %1014 = vmatmul.mubr.bf16.gmra.mxu0 %v214
        %v1015 = vpop.f32.mrf.mxu0
        %v1016 = vadd.f32 0.0, %v1015
        %v1017 = vpop.f32.mrf.mxu0
        %v1018 = vpop.f32.mrf.mxu0
        %v1019 = vpop.f32.mrf.mxu0
        %1020 = vdwg.mxu0
        %1021 = vmatprep.subr.bf16.mxu0 0
        %1022 = vmatpush1.bf16.msra.mxu0 0
        %1023 = vmatprep.subr.bf16.mxu0 0
        %1024 = vmatpush1.bf16.msra.mxu0 0
        %1025 = vmatprep.subr.bf16.mxu0 0
        %1026 = vmatpush1.bf16.msra.mxu0 0
        %1027 = vmatprep.subr.bf16.mxu0 0
        %1028 = vmatpush1.bf16.msra.mxu0 0
        %1029 = vmatprep.subr.bf16.mxu0 0
        %1030 = vmatpush1.bf16.msra.mxu0 0
        %1031 = vmatprep.subr.bf16.mxu0 0
        %1032 = vmatpush1.bf16.msra.mxu0 0
        %1033 = vmatprep.subr.bf16.mxu0 0
        %1034 = vmatpush1.bf16.msra.mxu0 0
        %1035 = vmatprep.subr.bf16.mxu0 0
        %1036 = vmatpush1.bf16.msra.mxu0 %v881
        %1037 = vmatprep.subr.bf16.mxu0 0
        %1038 = vmatpush2.bf16.msra.mxu0 0
        %1039 = vmatprep.subr.bf16.mxu0 0
        %1040 = vmatpush2.bf16.msra.mxu0 0
        %1041 = vmatprep.subr.bf16.mxu0 0
        %1042 = vmatpush2.bf16.msra.mxu0 0
        %1043 = vmatprep.subr.bf16.mxu0 0
        %1044 = vmatpush2.bf16.msra.mxu0 0
        %1045 = vmatprep.subr.bf16.mxu0 0
        %1046 = vmatpush2.bf16.msra.mxu0 0
        %1047 = vmatprep.subr.bf16.mxu0 0
        %1048 = vmatpush2.bf16.msra.mxu0 0
        %1049 = vmatprep.subr.bf16.mxu0 0
        %1050 = vmatpush2.bf16.msra.mxu0 0
        %1051 = vmatprep.subr.bf16.mxu0 0
        %1052 = vmatpush2.bf16.msra.mxu0 0
        %1053 = vmatprep.mubr.bf16.mxu0 0
        %1054 = vmatmul.mubr.bf16.gmra.mxu0 %v261
        %v1055 = vpop.f32.mrf.mxu0
        %v1056 = vadd.f32 %v1016, %v1055
        %v1057 = vpop.f32.mrf.mxu0
        %v1058 = vpop.f32.mrf.mxu0
        %v1059 = vpop.f32.mrf.mxu0
        %1060 = vdwg.mxu0
        %v1063 = vunpack.c.l.b16 %v979
        %v1064 = vunpack.c.l.b16 %v980
        %v1065 = vpack.c.b16 %v1064, %v1063
        %v1067 = vsel %vm216, %v1065, 0
        %1069 = vmatprep.subr.bf16.mxu0 0
        %1070 = vmatpush1.bf16.msra.mxu0 0
        %1071 = vmatprep.subr.bf16.mxu0 0
        %1072 = vmatpush1.bf16.msra.mxu0 0
        %1073 = vmatprep.subr.bf16.mxu0 0
        %1074 = vmatpush1.bf16.msra.mxu0 0
        %1075 = vmatprep.subr.bf16.mxu0 0
        %1076 = vmatpush1.bf16.msra.mxu0 0
        %1077 = vmatprep.subr.bf16.mxu0 0
        %1078 = vmatpush1.bf16.msra.mxu0 0
        %1079 = vmatprep.subr.bf16.mxu0 0
        %1080 = vmatpush1.bf16.msra.mxu0 0
        %1081 = vmatprep.subr.bf16.mxu0 0
        %1082 = vmatpush1.bf16.msra.mxu0 0
        %1083 = vmatprep.subr.bf16.mxu0 0
        %1084 = vmatpush1.bf16.msra.mxu0 %v1067
        %1085 = vmatprep.subr.bf16.mxu0 0
        %1086 = vmatpush2.bf16.msra.mxu0 0
        %1087 = vmatprep.subr.bf16.mxu0 0
        %1088 = vmatpush2.bf16.msra.mxu0 0
        %1089 = vmatprep.subr.bf16.mxu0 0
        %1090 = vmatpush2.bf16.msra.mxu0 0
        %1091 = vmatprep.subr.bf16.mxu0 0
        %1092 = vmatpush2.bf16.msra.mxu0 0
        %1093 = vmatprep.subr.bf16.mxu0 0
        %1094 = vmatpush2.bf16.msra.mxu0 0
        %1095 = vmatprep.subr.bf16.mxu0 0
        %1096 = vmatpush2.bf16.msra.mxu0 0
        %1097 = vmatprep.subr.bf16.mxu0 0
        %1098 = vmatpush2.bf16.msra.mxu0 0
        %1099 = vmatprep.subr.bf16.mxu0 0
        %1100 = vmatpush2.bf16.msra.mxu0 0
        %1101 = vmatprep.mubr.bf16.mxu0 0
        %1102 = vmatmul.mubr.bf16.gmra.mxu0 %v312
        %v1103 = vpop.f32.mrf.mxu0
        %v1104 = vadd.f32 0.0, %v1103
        %v1105 = vpop.f32.mrf.mxu0
        %v1106 = vpop.f32.mrf.mxu0
        %v1107 = vpop.f32.mrf.mxu0
        %1108 = vdwg.mxu0
        %v1109 = vadd.f32 %v1056, %v1104
        %1110 = vrot.lane.b32.xlu0 %v1065, 127
        %v1111 = vpop.permute.xlu0 %1110
        %v1113 = vsel %vm216, %v1111, 0
        %1115 = vmatprep.subr.bf16.mxu0 0
        %1116 = vmatpush1.bf16.msra.mxu0 0
        %1117 = vmatprep.subr.bf16.mxu0 0
        %1118 = vmatpush1.bf16.msra.mxu0 0
        %1119 = vmatprep.subr.bf16.mxu0 0
        %1120 = vmatpush1.bf16.msra.mxu0 0
        %1121 = vmatprep.subr.bf16.mxu0 0
        %1122 = vmatpush1.bf16.msra.mxu0 0
        %1123 = vmatprep.subr.bf16.mxu0 0
        %1124 = vmatpush1.bf16.msra.mxu0 0
        %1125 = vmatprep.subr.bf16.mxu0 0
        %1126 = vmatpush1.bf16.msra.mxu0 0
        %1127 = vmatprep.subr.bf16.mxu0 0
        %1128 = vmatpush1.bf16.msra.mxu0 0
        %1129 = vmatprep.subr.bf16.mxu0 0
        %1130 = vmatpush1.bf16.msra.mxu0 %v1113
        %1131 = vmatprep.subr.bf16.mxu0 0
        %1132 = vmatpush2.bf16.msra.mxu0 0
        %1133 = vmatprep.subr.bf16.mxu0 0
        %1134 = vmatpush2.bf16.msra.mxu0 0
        %1135 = vmatprep.subr.bf16.mxu0 0
        %1136 = vmatpush2.bf16.msra.mxu0 0
        %1137 = vmatprep.subr.bf16.mxu0 0
        %1138 = vmatpush2.bf16.msra.mxu0 0
        %1139 = vmatprep.subr.bf16.mxu0 0
        %1140 = vmatpush2.bf16.msra.mxu0 0
        %1141 = vmatprep.subr.bf16.mxu0 0
        %1142 = vmatpush2.bf16.msra.mxu0 0
        %1143 = vmatprep.subr.bf16.mxu0 0
        %1144 = vmatpush2.bf16.msra.mxu0 0
        %1145 = vmatprep.subr.bf16.mxu0 0
        %1146 = vmatpush2.bf16.msra.mxu0 0
        %1147 = vmatprep.mubr.bf16.mxu0 0
        %1148 = vmatmul.mubr.bf16.gmra.mxu0 %v361
        %v1149 = vpop.f32.mrf.mxu0
        %v1150 = vadd.f32 0.0, %v1149
        %v1151 = vpop.f32.mrf.mxu0
        %v1152 = vpop.f32.mrf.mxu0
        %v1153 = vpop.f32.mrf.mxu0
        %1154 = vdwg.mxu0
        %v1155 = vadd.f32 %v1109, %v1150
        %v1156 = vadd.f32 %v1155, %v410
        %v1157 = vmax.f32 %v1156, 0.0
        %v1158 = vpack.c.bf16 %v1157, %v1157
        %s1159 = scalar_lea.vmem %s177, 16 [#allocation2]
        %1160 = vst.msk [vmem:[%s1159] sm:$0xf] %vm415, %v1158
        %s1161 = sadd.s32 %s185, 6
        %s1162 = smul.u32 %s1161, 2
        %s1163 = smul.addr %s1162, 4
        %s1164 = scalar_lea.vmem %s182, %s1163
        %v1165 = vld [vmem:[%s1164] sm:$0xf]
        %v1166 = vld [vmem:[%s1164 + $0x4] sm:$0x3]
        %1167 = vmatprep.subr.bf16.mxu0 0
        %1168 = vmatpush1.bf16.msra.mxu0 0
        %1169 = vmatprep.subr.bf16.mxu0 0
        %1170 = vmatpush1.bf16.msra.mxu0 0
        %1171 = vmatprep.subr.bf16.mxu0 0
        %1172 = vmatpush1.bf16.msra.mxu0 0
        %1173 = vmatprep.subr.bf16.mxu0 0
        %1174 = vmatpush1.bf16.msra.mxu0 0
        %1175 = vmatprep.subr.bf16.mxu0 0
        %1176 = vmatpush1.bf16.msra.mxu0 0
        %1177 = vmatprep.subr.bf16.mxu0 0
        %1178 = vmatpush1.bf16.msra.mxu0 0
        %1179 = vmatprep.subr.bf16.mxu0 0
        %1180 = vmatpush1.bf16.msra.mxu0 0
        %1181 = vmatprep.subr.bf16.mxu0 0
        %1182 = vmatpush1.bf16.msra.mxu0 %v1113
        %1183 = vmatprep.subr.bf16.mxu0 0
        %1184 = vmatpush2.bf16.msra.mxu0 0
        %1185 = vmatprep.subr.bf16.mxu0 0
        %1186 = vmatpush2.bf16.msra.mxu0 0
        %1187 = vmatprep.subr.bf16.mxu0 0
        %1188 = vmatpush2.bf16.msra.mxu0 0
        %1189 = vmatprep.subr.bf16.mxu0 0
        %1190 = vmatpush2.bf16.msra.mxu0 0
        %1191 = vmatprep.subr.bf16.mxu0 0
        %1192 = vmatpush2.bf16.msra.mxu0 0
        %1193 = vmatprep.subr.bf16.mxu0 0
        %1194 = vmatpush2.bf16.msra.mxu0 0
        %1195 = vmatprep.subr.bf16.mxu0 0
        %1196 = vmatpush2.bf16.msra.mxu0 0
        %1197 = vmatprep.subr.bf16.mxu0 0
        %1198 = vmatpush2.bf16.msra.mxu0 0
        %1199 = vmatprep.mubr.bf16.mxu0 0
        %1200 = vmatmul.mubr.bf16.gmra.mxu0 %v214
        %v1201 = vpop.f32.mrf.mxu0
        %v1202 = vadd.f32 0.0, %v1201
        %v1203 = vpop.f32.mrf.mxu0
        %v1204 = vpop.f32.mrf.mxu0
        %v1205 = vpop.f32.mrf.mxu0
        %1206 = vdwg.mxu0
        %1207 = vmatprep.subr.bf16.mxu0 0
        %1208 = vmatpush1.bf16.msra.mxu0 0
        %1209 = vmatprep.subr.bf16.mxu0 0
        %1210 = vmatpush1.bf16.msra.mxu0 0
        %1211 = vmatprep.subr.bf16.mxu0 0
        %1212 = vmatpush1.bf16.msra.mxu0 0
        %1213 = vmatprep.subr.bf16.mxu0 0
        %1214 = vmatpush1.bf16.msra.mxu0 0
        %1215 = vmatprep.subr.bf16.mxu0 0
        %1216 = vmatpush1.bf16.msra.mxu0 0
        %1217 = vmatprep.subr.bf16.mxu0 0
        %1218 = vmatpush1.bf16.msra.mxu0 0
        %1219 = vmatprep.subr.bf16.mxu0 0
        %1220 = vmatpush1.bf16.msra.mxu0 0
        %1221 = vmatprep.subr.bf16.mxu0 0
        %1222 = vmatpush1.bf16.msra.mxu0 %v1067
        %1223 = vmatprep.subr.bf16.mxu0 0
        %1224 = vmatpush2.bf16.msra.mxu0 0
        %1225 = vmatprep.subr.bf16.mxu0 0
        %1226 = vmatpush2.bf16.msra.mxu0 0
        %1227 = vmatprep.subr.bf16.mxu0 0
        %1228 = vmatpush2.bf16.msra.mxu0 0
        %1229 = vmatprep.subr.bf16.mxu0 0
        %1230 = vmatpush2.bf16.msra.mxu0 0
        %1231 = vmatprep.subr.bf16.mxu0 0
        %1232 = vmatpush2.bf16.msra.mxu0 0
        %1233 = vmatprep.subr.bf16.mxu0 0
        %1234 = vmatpush2.bf16.msra.mxu0 0
        %1235 = vmatprep.subr.bf16.mxu0 0
        %1236 = vmatpush2.bf16.msra.mxu0 0
        %1237 = vmatprep.subr.bf16.mxu0 0
        %1238 = vmatpush2.bf16.msra.mxu0 0
        %1239 = vmatprep.mubr.bf16.mxu0 0
        %1240 = vmatmul.mubr.bf16.gmra.mxu0 %v261
        %v1241 = vpop.f32.mrf.mxu0
        %v1242 = vadd.f32 %v1202, %v1241
        %v1243 = vpop.f32.mrf.mxu0
        %v1244 = vpop.f32.mrf.mxu0
        %v1245 = vpop.f32.mrf.mxu0
        %1246 = vdwg.mxu0
        %v1249 = vunpack.c.l.b16 %v1165
        %v1250 = vunpack.c.l.b16 %v1166
        %v1251 = vpack.c.b16 %v1250, %v1249
        %v1253 = vsel %vm216, %v1251, 0
        %1255 = vmatprep.subr.bf16.mxu0 0
        %1256 = vmatpush1.bf16.msra.mxu0 0
        %1257 = vmatprep.subr.bf16.mxu0 0
        %1258 = vmatpush1.bf16.msra.mxu0 0
        %1259 = vmatprep.subr.bf16.mxu0 0
        %1260 = vmatpush1.bf16.msra.mxu0 0
        %1261 = vmatprep.subr.bf16.mxu0 0
        %1262 = vmatpush1.bf16.msra.mxu0 0
        %1263 = vmatprep.subr.bf16.mxu0 0
        %1264 = vmatpush1.bf16.msra.mxu0 0
        %1265 = vmatprep.subr.bf16.mxu0 0
        %1266 = vmatpush1.bf16.msra.mxu0 0
        %1267 = vmatprep.subr.bf16.mxu0 0
        %1268 = vmatpush1.bf16.msra.mxu0 0
        %1269 = vmatprep.subr.bf16.mxu0 0
        %1270 = vmatpush1.bf16.msra.mxu0 %v1253
        %1271 = vmatprep.subr.bf16.mxu0 0
        %1272 = vmatpush2.bf16.msra.mxu0 0
        %1273 = vmatprep.subr.bf16.mxu0 0
        %1274 = vmatpush2.bf16.msra.mxu0 0
        %1275 = vmatprep.subr.bf16.mxu0 0
        %1276 = vmatpush2.bf16.msra.mxu0 0
        %1277 = vmatprep.subr.bf16.mxu0 0
        %1278 = vmatpush2.bf16.msra.mxu0 0
        %1279 = vmatprep.subr.bf16.mxu0 0
        %1280 = vmatpush2.bf16.msra.mxu0 0
        %1281 = vmatprep.subr.bf16.mxu0 0
        %1282 = vmatpush2.bf16.msra.mxu0 0
        %1283 = vmatprep.subr.bf16.mxu0 0
        %1284 = vmatpush2.bf16.msra.mxu0 0
        %1285 = vmatprep.subr.bf16.mxu0 0
        %1286 = vmatpush2.bf16.msra.mxu0 0
        %1287 = vmatprep.mubr.bf16.mxu0 0
        %1288 = vmatmul.mubr.bf16.gmra.mxu0 %v312
        %v1289 = vpop.f32.mrf.mxu0
        %v1290 = vadd.f32 0.0, %v1289
        %v1291 = vpop.f32.mrf.mxu0
        %v1292 = vpop.f32.mrf.mxu0
        %v1293 = vpop.f32.mrf.mxu0
        %1294 = vdwg.mxu0
        %v1295 = vadd.f32 %v1242, %v1290
        %1296 = vrot.lane.b32.xlu0 %v1251, 127
        %v1297 = vpop.permute.xlu0 %1296
        %v1299 = vsel %vm216, %v1297, 0
        %1301 = vmatprep.subr.bf16.mxu0 0
        %1302 = vmatpush1.bf16.msra.mxu0 0
        %1303 = vmatprep.subr.bf16.mxu0 0
        %1304 = vmatpush1.bf16.msra.mxu0 0
        %1305 = vmatprep.subr.bf16.mxu0 0
        %1306 = vmatpush1.bf16.msra.mxu0 0
        %1307 = vmatprep.subr.bf16.mxu0 0
        %1308 = vmatpush1.bf16.msra.mxu0 0
        %1309 = vmatprep.subr.bf16.mxu0 0
        %1310 = vmatpush1.bf16.msra.mxu0 0
        %1311 = vmatprep.subr.bf16.mxu0 0
        %1312 = vmatpush1.bf16.msra.mxu0 0
        %1313 = vmatprep.subr.bf16.mxu0 0
        %1314 = vmatpush1.bf16.msra.mxu0 0
        %1315 = vmatprep.subr.bf16.mxu0 0
        %1316 = vmatpush1.bf16.msra.mxu0 %v1299
        %1317 = vmatprep.subr.bf16.mxu0 0
        %1318 = vmatpush2.bf16.msra.mxu0 0
        %1319 = vmatprep.subr.bf16.mxu0 0
        %1320 = vmatpush2.bf16.msra.mxu0 0
        %1321 = vmatprep.subr.bf16.mxu0 0
        %1322 = vmatpush2.bf16.msra.mxu0 0
        %1323 = vmatprep.subr.bf16.mxu0 0
        %1324 = vmatpush2.bf16.msra.mxu0 0
        %1325 = vmatprep.subr.bf16.mxu0 0
        %1326 = vmatpush2.bf16.msra.mxu0 0
        %1327 = vmatprep.subr.bf16.mxu0 0
        %1328 = vmatpush2.bf16.msra.mxu0 0
        %1329 = vmatprep.subr.bf16.mxu0 0
        %1330 = vmatpush2.bf16.msra.mxu0 0
        %1331 = vmatprep.subr.bf16.mxu0 0
        %1332 = vmatpush2.bf16.msra.mxu0 0
        %1333 = vmatprep.mubr.bf16.mxu0 0
        %1334 = vmatmul.mubr.bf16.gmra.mxu0 %v361
        %v1335 = vpop.f32.mrf.mxu0
        %v1336 = vadd.f32 0.0, %v1335
        %v1337 = vpop.f32.mrf.mxu0
        %v1338 = vpop.f32.mrf.mxu0
        %v1339 = vpop.f32.mrf.mxu0
        %1340 = vdwg.mxu0
        %v1341 = vadd.f32 %v1295, %v1336
        %v1342 = vadd.f32 %v1341, %v410
        %v1343 = vmax.f32 %v1342, 0.0
        %v1344 = vpack.c.bf16 %v1343, %v1343
        %s1345 = scalar_lea.vmem %s177, 20 [#allocation2]
        %1346 = vst.msk [vmem:[%s1345] sm:$0xf] %vm415, %v1344
        %s1347 = sadd.s32 %s185, 7
        %s1348 = smul.u32 %s1347, 2
        %s1349 = smul.addr %s1348, 4
        %s1350 = scalar_lea.vmem %s182, %s1349
        %v1351 = vld [vmem:[%s1350] sm:$0xf]
        %v1352 = vld [vmem:[%s1350 + $0x4] sm:$0x3]
        %1353 = vmatprep.subr.bf16.mxu0 0
        %1354 = vmatpush1.bf16.msra.mxu0 0
        %1355 = vmatprep.subr.bf16.mxu0 0
        %1356 = vmatpush1.bf16.msra.mxu0 0
        %1357 = vmatprep.subr.bf16.mxu0 0
        %1358 = vmatpush1.bf16.msra.mxu0 0
        %1359 = vmatprep.subr.bf16.mxu0 0
        %1360 = vmatpush1.bf16.msra.mxu0 0
        %1361 = vmatprep.subr.bf16.mxu0 0
        %1362 = vmatpush1.bf16.msra.mxu0 0
        %1363 = vmatprep.subr.bf16.mxu0 0
        %1364 = vmatpush1.bf16.msra.mxu0 0
        %1365 = vmatprep.subr.bf16.mxu0 0
        %1366 = vmatpush1.bf16.msra.mxu0 0
        %1367 = vmatprep.subr.bf16.mxu0 0
        %1368 = vmatpush1.bf16.msra.mxu0 %v1299
        %1369 = vmatprep.subr.bf16.mxu0 0
        %1370 = vmatpush2.bf16.msra.mxu0 0
        %1371 = vmatprep.subr.bf16.mxu0 0
        %1372 = vmatpush2.bf16.msra.mxu0 0
        %1373 = vmatprep.subr.bf16.mxu0 0
        %1374 = vmatpush2.bf16.msra.mxu0 0
        %1375 = vmatprep.subr.bf16.mxu0 0
        %1376 = vmatpush2.bf16.msra.mxu0 0
        %1377 = vmatprep.subr.bf16.mxu0 0
        %1378 = vmatpush2.bf16.msra.mxu0 0
        %1379 = vmatprep.subr.bf16.mxu0 0
        %1380 = vmatpush2.bf16.msra.mxu0 0
        %1381 = vmatprep.subr.bf16.mxu0 0
        %1382 = vmatpush2.bf16.msra.mxu0 0
        %1383 = vmatprep.subr.bf16.mxu0 0
        %1384 = vmatpush2.bf16.msra.mxu0 0
        %1385 = vmatprep.mubr.bf16.mxu0 0
        %1386 = vmatmul.mubr.bf16.gmra.mxu0 %v214
        %v1387 = vpop.f32.mrf.mxu0
        %v1388 = vadd.f32 0.0, %v1387
        %v1389 = vpop.f32.mrf.mxu0
        %v1390 = vpop.f32.mrf.mxu0
        %v1391 = vpop.f32.mrf.mxu0
        %1392 = vdwg.mxu0
        %1393 = vmatprep.subr.bf16.mxu0 0
        %1394 = vmatpush1.bf16.msra.mxu0 0
        %1395 = vmatprep.subr.bf16.mxu0 0
        %1396 = vmatpush1.bf16.msra.mxu0 0
        %1397 = vmatprep.subr.bf16.mxu0 0
        %1398 = vmatpush1.bf16.msra.mxu0 0
        %1399 = vmatprep.subr.bf16.mxu0 0
        %1400 = vmatpush1.bf16.msra.mxu0 0
        %1401 = vmatprep.subr.bf16.mxu0 0
        %1402 = vmatpush1.bf16.msra.mxu0 0
        %1403 = vmatprep.subr.bf16.mxu0 0
        %1404 = vmatpush1.bf16.msra.mxu0 0
        %1405 = vmatprep.subr.bf16.mxu0 0
        %1406 = vmatpush1.bf16.msra.mxu0 0
        %1407 = vmatprep.subr.bf16.mxu0 0
        %1408 = vmatpush1.bf16.msra.mxu0 %v1253
        %1409 = vmatprep.subr.bf16.mxu0 0
        %1410 = vmatpush2.bf16.msra.mxu0 0
        %1411 = vmatprep.subr.bf16.mxu0 0
        %1412 = vmatpush2.bf16.msra.mxu0 0
        %1413 = vmatprep.subr.bf16.mxu0 0
        %1414 = vmatpush2.bf16.msra.mxu0 0
        %1415 = vmatprep.subr.bf16.mxu0 0
        %1416 = vmatpush2.bf16.msra.mxu0 0
        %1417 = vmatprep.subr.bf16.mxu0 0
        %1418 = vmatpush2.bf16.msra.mxu0 0
        %1419 = vmatprep.subr.bf16.mxu0 0
        %1420 = vmatpush2.bf16.msra.mxu0 0
        %1421 = vmatprep.subr.bf16.mxu0 0
        %1422 = vmatpush2.bf16.msra.mxu0 0
        %1423 = vmatprep.subr.bf16.mxu0 0
        %1424 = vmatpush2.bf16.msra.mxu0 0
        %1425 = vmatprep.mubr.bf16.mxu0 0
        %1426 = vmatmul.mubr.bf16.gmra.mxu0 %v261
        %v1427 = vpop.f32.mrf.mxu0
        %v1428 = vadd.f32 %v1388, %v1427
        %v1429 = vpop.f32.mrf.mxu0
        %v1430 = vpop.f32.mrf.mxu0
        %v1431 = vpop.f32.mrf.mxu0
        %1432 = vdwg.mxu0
        %v1435 = vunpack.c.l.b16 %v1351
        %v1436 = vunpack.c.l.b16 %v1352
        %v1437 = vpack.c.b16 %v1436, %v1435
        %v1439 = vsel %vm216, %v1437, 0
        %1441 = vmatprep.subr.bf16.mxu0 0
        %1442 = vmatpush1.bf16.msra.mxu0 0
        %1443 = vmatprep.subr.bf16.mxu0 0
        %1444 = vmatpush1.bf16.msra.mxu0 0
        %1445 = vmatprep.subr.bf16.mxu0 0
        %1446 = vmatpush1.bf16.msra.mxu0 0
        %1447 = vmatprep.subr.bf16.mxu0 0
        %1448 = vmatpush1.bf16.msra.mxu0 0
        %1449 = vmatprep.subr.bf16.mxu0 0
        %1450 = vmatpush1.bf16.msra.mxu0 0
        %1451 = vmatprep.subr.bf16.mxu0 0
        %1452 = vmatpush1.bf16.msra.mxu0 0
        %1453 = vmatprep.subr.bf16.mxu0 0
        %1454 = vmatpush1.bf16.msra.mxu0 0
        %1455 = vmatprep.subr.bf16.mxu0 0
        %1456 = vmatpush1.bf16.msra.mxu0 %v1439
        %1457 = vmatprep.subr.bf16.mxu0 0
        %1458 = vmatpush2.bf16.msra.mxu0 0
        %1459 = vmatprep.subr.bf16.mxu0 0
        %1460 = vmatpush2.bf16.msra.mxu0 0
        %1461 = vmatprep.subr.bf16.mxu0 0
        %1462 = vmatpush2.bf16.msra.mxu0 0
        %1463 = vmatprep.subr.bf16.mxu0 0
        %1464 = vmatpush2.bf16.msra.mxu0 0
        %1465 = vmatprep.subr.bf16.mxu0 0
        %1466 = vmatpush2.bf16.msra.mxu0 0
        %1467 = vmatprep.subr.bf16.mxu0 0
        %1468 = vmatpush2.bf16.msra.mxu0 0
        %1469 = vmatprep.subr.bf16.mxu0 0
        %1470 = vmatpush2.bf16.msra.mxu0 0
        %1471 = vmatprep.subr.bf16.mxu0 0
        %1472 = vmatpush2.bf16.msra.mxu0 0
        %1473 = vmatprep.mubr.bf16.mxu0 0
        %1474 = vmatmul.mubr.bf16.gmra.mxu0 %v312
        %v1475 = vpop.f32.mrf.mxu0
        %v1476 = vadd.f32 0.0, %v1475
        %v1477 = vpop.f32.mrf.mxu0
        %v1478 = vpop.f32.mrf.mxu0
        %v1479 = vpop.f32.mrf.mxu0
        %1480 = vdwg.mxu0
        %v1481 = vadd.f32 %v1428, %v1476
        %1482 = vrot.lane.b32.xlu0 %v1437, 127
        %v1483 = vpop.permute.xlu0 %1482
        %v1485 = vsel %vm216, %v1483, 0
        %1487 = vmatprep.subr.bf16.mxu0 0
        %1488 = vmatpush1.bf16.msra.mxu0 0
        %1489 = vmatprep.subr.bf16.mxu0 0
        %1490 = vmatpush1.bf16.msra.mxu0 0
        %1491 = vmatprep.subr.bf16.mxu0 0
        %1492 = vmatpush1.bf16.msra.mxu0 0
        %1493 = vmatprep.subr.bf16.mxu0 0
        %1494 = vmatpush1.bf16.msra.mxu0 0
        %1495 = vmatprep.subr.bf16.mxu0 0
        %1496 = vmatpush1.bf16.msra.mxu0 0
        %1497 = vmatprep.subr.bf16.mxu0 0
        %1498 = vmatpush1.bf16.msra.mxu0 0
        %1499 = vmatprep.subr.bf16.mxu0 0
        %1500 = vmatpush1.bf16.msra.mxu0 0
        %1501 = vmatprep.subr.bf16.mxu0 0
        %1502 = vmatpush1.bf16.msra.mxu0 %v1485
        %1503 = vmatprep.subr.bf16.mxu0 0
        %1504 = vmatpush2.bf16.msra.mxu0 0
        %1505 = vmatprep.subr.bf16.mxu0 0
        %1506 = vmatpush2.bf16.msra.mxu0 0
        %1507 = vmatprep.subr.bf16.mxu0 0
        %1508 = vmatpush2.bf16.msra.mxu0 0
        %1509 = vmatprep.subr.bf16.mxu0 0
        %1510 = vmatpush2.bf16.msra.mxu0 0
        %1511 = vmatprep.subr.bf16.mxu0 0
        %1512 = vmatpush2.bf16.msra.mxu0 0
        %1513 = vmatprep.subr.bf16.mxu0 0
        %1514 = vmatpush2.bf16.msra.mxu0 0
        %1515 = vmatprep.subr.bf16.mxu0 0
        %1516 = vmatpush2.bf16.msra.mxu0 0
        %1517 = vmatprep.subr.bf16.mxu0 0
        %1518 = vmatpush2.bf16.msra.mxu0 0
        %1519 = vmatprep.mubr.bf16.mxu0 0
        %1520 = vmatmul.mubr.bf16.gmra.mxu0 %v361
        %v1521 = vpop.f32.mrf.mxu0
        %v1522 = vadd.f32 0.0, %v1521
        %v1523 = vpop.f32.mrf.mxu0
        %v1524 = vpop.f32.mrf.mxu0
        %v1525 = vpop.f32.mrf.mxu0
        %1526 = vdwg.mxu0
        %v1527 = vadd.f32 %v1481, %v1522
        %v1528 = vadd.f32 %v1527, %v410
        %v1529 = vmax.f32 %v1528, 0.0
        %v1530 = vpack.c.bf16 %v1529, %v1529
        %s1531 = scalar_lea.vmem %s177, 24 [#allocation2]
        %1532 = vst.msk [vmem:[%s1531] sm:$0xf] %vm415, %v1530
        %s1533 = sadd.s32 %s185, 8
        %s1534 = smul.u32 %s1533, 2
        %s1535 = smul.addr %s1534, 4
        %s1536 = scalar_lea.vmem %s182, %s1535
        %v1537 = vld [vmem:[%s1536] sm:$0xf]
        %v1538 = vld [vmem:[%s1536 + $0x4] sm:$0x3]
        %1539 = vmatprep.subr.bf16.mxu0 0
        %1540 = vmatpush1.bf16.msra.mxu0 0
        %1541 = vmatprep.subr.bf16.mxu0 0
        %1542 = vmatpush1.bf16.msra.mxu0 0
        %1543 = vmatprep.subr.bf16.mxu0 0
        %1544 = vmatpush1.bf16.msra.mxu0 0
        %1545 = vmatprep.subr.bf16.mxu0 0
        %1546 = vmatpush1.bf16.msra.mxu0 0
        %1547 = vmatprep.subr.bf16.mxu0 0
        %1548 = vmatpush1.bf16.msra.mxu0 0
        %1549 = vmatprep.subr.bf16.mxu0 0
        %1550 = vmatpush1.bf16.msra.mxu0 0
        %1551 = vmatprep.subr.bf16.mxu0 0
        %1552 = vmatpush1.bf16.msra.mxu0 0
        %1553 = vmatprep.subr.bf16.mxu0 0
        %1554 = vmatpush1.bf16.msra.mxu0 %v1485
        %1555 = vmatprep.subr.bf16.mxu0 0
        %1556 = vmatpush2.bf16.msra.mxu0 0
        %1557 = vmatprep.subr.bf16.mxu0 0
        %1558 = vmatpush2.bf16.msra.mxu0 0
        %1559 = vmatprep.subr.bf16.mxu0 0
        %1560 = vmatpush2.bf16.msra.mxu0 0
        %1561 = vmatprep.subr.bf16.mxu0 0
        %1562 = vmatpush2.bf16.msra.mxu0 0
        %1563 = vmatprep.subr.bf16.mxu0 0
        %1564 = vmatpush2.bf16.msra.mxu0 0
        %1565 = vmatprep.subr.bf16.mxu0 0
        %1566 = vmatpush2.bf16.msra.mxu0 0
        %1567 = vmatprep.subr.bf16.mxu0 0
        %1568 = vmatpush2.bf16.msra.mxu0 0
        %1569 = vmatprep.subr.bf16.mxu0 0
        %1570 = vmatpush2.bf16.msra.mxu0 0
        %1571 = vmatprep.mubr.bf16.mxu0 0
        %1572 = vmatmul.mubr.bf16.gmra.mxu0 %v214
        %v1573 = vpop.f32.mrf.mxu0
        %v1574 = vadd.f32 0.0, %v1573
        %v1575 = vpop.f32.mrf.mxu0
        %v1576 = vpop.f32.mrf.mxu0
        %v1577 = vpop.f32.mrf.mxu0
        %1578 = vdwg.mxu0
        %1579 = vmatprep.subr.bf16.mxu0 0
        %1580 = vmatpush1.bf16.msra.mxu0 0
        %1581 = vmatprep.subr.bf16.mxu0 0
        %1582 = vmatpush1.bf16.msra.mxu0 0
        %1583 = vmatprep.subr.bf16.mxu0 0
        %1584 = vmatpush1.bf16.msra.mxu0 0
        %1585 = vmatprep.subr.bf16.mxu0 0
        %1586 = vmatpush1.bf16.msra.mxu0 0
        %1587 = vmatprep.subr.bf16.mxu0 0
        %1588 = vmatpush1.bf16.msra.mxu0 0
        %1589 = vmatprep.subr.bf16.mxu0 0
        %1590 = vmatpush1.bf16.msra.mxu0 0
        %1591 = vmatprep.subr.bf16.mxu0 0
        %1592 = vmatpush1.bf16.msra.mxu0 0
        %1593 = vmatprep.subr.bf16.mxu0 0
        %1594 = vmatpush1.bf16.msra.mxu0 %v1439
        %1595 = vmatprep.subr.bf16.mxu0 0
        %1596 = vmatpush2.bf16.msra.mxu0 0
        %1597 = vmatprep.subr.bf16.mxu0 0
        %1598 = vmatpush2.bf16.msra.mxu0 0
        %1599 = vmatprep.subr.bf16.mxu0 0
        %1600 = vmatpush2.bf16.msra.mxu0 0
        %1601 = vmatprep.subr.bf16.mxu0 0
        %1602 = vmatpush2.bf16.msra.mxu0 0
        %1603 = vmatprep.subr.bf16.mxu0 0
        %1604 = vmatpush2.bf16.msra.mxu0 0
        %1605 = vmatprep.subr.bf16.mxu0 0
        %1606 = vmatpush2.bf16.msra.mxu0 0
        %1607 = vmatprep.subr.bf16.mxu0 0
        %1608 = vmatpush2.bf16.msra.mxu0 0
        %1609 = vmatprep.subr.bf16.mxu0 0
        %1610 = vmatpush2.bf16.msra.mxu0 0
        %1611 = vmatprep.mubr.bf16.mxu0 0
        %1612 = vmatmul.mubr.bf16.gmra.mxu0 %v261
        %v1613 = vpop.f32.mrf.mxu0
        %v1614 = vadd.f32 %v1574, %v1613
        %v1615 = vpop.f32.mrf.mxu0
        %v1616 = vpop.f32.mrf.mxu0
        %v1617 = vpop.f32.mrf.mxu0
        %1618 = vdwg.mxu0
        %v1621 = vunpack.c.l.b16 %v1537
        %v1622 = vunpack.c.l.b16 %v1538
        %v1623 = vpack.c.b16 %v1622, %v1621
        %v1625 = vsel %vm216, %v1623, 0
        %1627 = vmatprep.subr.bf16.mxu0 0
        %1628 = vmatpush1.bf16.msra.mxu0 0
        %1629 = vmatprep.subr.bf16.mxu0 0
        %1630 = vmatpush1.bf16.msra.mxu0 0
        %1631 = vmatprep.subr.bf16.mxu0 0
        %1632 = vmatpush1.bf16.msra.mxu0 0
        %1633 = vmatprep.subr.bf16.mxu0 0
        %1634 = vmatpush1.bf16.msra.mxu0 0
        %1635 = vmatprep.subr.bf16.mxu0 0
        %1636 = vmatpush1.bf16.msra.mxu0 0
        %1637 = vmatprep.subr.bf16.mxu0 0
        %1638 = vmatpush1.bf16.msra.mxu0 0
        %1639 = vmatprep.subr.bf16.mxu0 0
        %1640 = vmatpush1.bf16.msra.mxu0 0
        %1641 = vmatprep.subr.bf16.mxu0 0
        %1642 = vmatpush1.bf16.msra.mxu0 %v1625
        %1643 = vmatprep.subr.bf16.mxu0 0
        %1644 = vmatpush2.bf16.msra.mxu0 0
        %1645 = vmatprep.subr.bf16.mxu0 0
        %1646 = vmatpush2.bf16.msra.mxu0 0
        %1647 = vmatprep.subr.bf16.mxu0 0
        %1648 = vmatpush2.bf16.msra.mxu0 0
        %1649 = vmatprep.subr.bf16.mxu0 0
        %1650 = vmatpush2.bf16.msra.mxu0 0
        %1651 = vmatprep.subr.bf16.mxu0 0
        %1652 = vmatpush2.bf16.msra.mxu0 0
        %1653 = vmatprep.subr.bf16.mxu0 0
        %1654 = vmatpush2.bf16.msra.mxu0 0
        %1655 = vmatprep.subr.bf16.mxu0 0
        %1656 = vmatpush2.bf16.msra.mxu0 0
        %1657 = vmatprep.subr.bf16.mxu0 0
        %1658 = vmatpush2.bf16.msra.mxu0 0
        %1659 = vmatprep.mubr.bf16.mxu0 0
        %1660 = vmatmul.mubr.bf16.gmra.mxu0 %v312
        %v1661 = vpop.f32.mrf.mxu0
        %v1662 = vadd.f32 0.0, %v1661
        %v1663 = vpop.f32.mrf.mxu0
        %v1664 = vpop.f32.mrf.mxu0
        %v1665 = vpop.f32.mrf.mxu0
        %1666 = vdwg.mxu0
        %v1667 = vadd.f32 %v1614, %v1662
        %1668 = vrot.lane.b32.xlu0 %v1623, 127
        %v1669 = vpop.permute.xlu0 %1668
        %v1671 = vsel %vm216, %v1669, 0
        %1673 = vmatprep.subr.bf16.mxu0 0
        %1674 = vmatpush1.bf16.msra.mxu0 0
        %1675 = vmatprep.subr.bf16.mxu0 0
        %1676 = vmatpush1.bf16.msra.mxu0 0
        %1677 = vmatprep.subr.bf16.mxu0 0
        %1678 = vmatpush1.bf16.msra.mxu0 0
        %1679 = vmatprep.subr.bf16.mxu0 0
        %1680 = vmatpush1.bf16.msra.mxu0 0
        %1681 = vmatprep.subr.bf16.mxu0 0
        %1682 = vmatpush1.bf16.msra.mxu0 0
        %1683 = vmatprep.subr.bf16.mxu0 0
        %1684 = vmatpush1.bf16.msra.mxu0 0
        %1685 = vmatprep.subr.bf16.mxu0 0
        %1686 = vmatpush1.bf16.msra.mxu0 0
        %1687 = vmatprep.subr.bf16.mxu0 0
        %1688 = vmatpush1.bf16.msra.mxu0 %v1671
        %1689 = vmatprep.subr.bf16.mxu0 0
        %1690 = vmatpush2.bf16.msra.mxu0 0
        %1691 = vmatprep.subr.bf16.mxu0 0
        %1692 = vmatpush2.bf16.msra.mxu0 0
        %1693 = vmatprep.subr.bf16.mxu0 0
        %1694 = vmatpush2.bf16.msra.mxu0 0
        %1695 = vmatprep.subr.bf16.mxu0 0
        %1696 = vmatpush2.bf16.msra.mxu0 0
        %1697 = vmatprep.subr.bf16.mxu0 0
        %1698 = vmatpush2.bf16.msra.mxu0 0
        %1699 = vmatprep.subr.bf16.mxu0 0
        %1700 = vmatpush2.bf16.msra.mxu0 0
        %1701 = vmatprep.subr.bf16.mxu0 0
        %1702 = vmatpush2.bf16.msra.mxu0 0
        %1703 = vmatprep.subr.bf16.mxu0 0
        %1704 = vmatpush2.bf16.msra.mxu0 0
        %1705 = vmatprep.mubr.bf16.mxu0 0
        %1706 = vmatmul.mubr.bf16.gmra.mxu0 %v361
        %v1707 = vpop.f32.mrf.mxu0
        %v1708 = vadd.f32 0.0, %v1707
        %v1709 = vpop.f32.mrf.mxu0
        %v1710 = vpop.f32.mrf.mxu0
        %v1711 = vpop.f32.mrf.mxu0
        %1712 = vdwg.mxu0
        %v1713 = vadd.f32 %v1667, %v1708
        %v1714 = vadd.f32 %v1713, %v410
        %v1715 = vmax.f32 %v1714, 0.0
        %v1716 = vpack.c.bf16 %v1715, %v1715
        %s1717 = scalar_lea.vmem %s177, 28 [#allocation2]
        %1718 = vst.msk [vmem:[%s1717] sm:$0xf] %vm415, %v1716
        %s1719 = sand.u32 %s107, 1
        %s1720 = scalar_lea.sflag [#allocation3], %s1719
        %s1721 = sand.u32 %s107, 1
        %s1722 = smul.addr %s1721, 32
        %s1723 = scalar_lea.vmem [#allocation2], %s1722
        // Predicated region
        $region33: #{tpu_custom_call.1} parent=31 // pred_check
          %p1724 = pneg %p117
        $region34: #{tpu_custom_call.1} parent=31 // pred_check_branch
          %1726 = sbr.rel (%p1724) target = $region36
        $region35: #{tpu_custom_call.1} parent=31 // pred_region
          %s1727 = smul.u32 8, %s22
          %s1729 = ssub.s32 512, 512
          %1730 = vsyncadd %s1720, %s1729
          %s1731 = smul.addr %s21, 16
          %s1732 = sadd.s32 %s1727, %s1731
          %s1733 = smul.addr %s1732, 64
          %s1734 = scalar_lea.hbm %s3, %s1733
          %s1735 = sshll.u32 %s1723, 4
          %s1736 = int_to_ptr.vmem [resolvable:$true] %s1735
          %1741 = dma.vmem_to_hbm [thread:$0]  %s1736, 512, %s1734, %s1720, 64, 64, 4
        $region36: #{tpu_custom_call.1} parent=31 // pred_fallthru
          _
      $region32: #{tpu_custom_call.1} parent=5 // pred_fallthru
        _
      %p1742 = scmp.le.s32.totalorder 2, %s12
      // Predicated region
      $region37: #{tpu_custom_call.1} parent=5 // pred_check
        %p1743 = pneg %p1742
      $region38: #{tpu_custom_call.1} parent=5 // pred_check_branch
        %1745 = sbr.rel (%p1743) target = $region40
      $region39: #{tpu_custom_call.1} parent=5 // pred_region
        %s1746 = ssub.s32 %s12, 2
        // Predicated region
        $region41: #{tpu_custom_call.1} parent=39 // pred_check
          %p1747 = pneg %p123
        $region42: #{tpu_custom_call.1} parent=39 // pred_check_branch
          %1749 = sbr.rel (%p1747) target = $region44
        $region43: #{tpu_custom_call.1} parent=39 // pred_region
          %s1750 = sand.u32 %s108, 1
          %s1751 = scalar_lea.sflag [#allocation3], %s1750
          %s1752 = sand.u32 %s108, 1
          %s1753 = smul.addr %s1752, 32
          %s1754 = scalar_lea.vmem [#allocation2], %s1753
          %1755 = dma.done %s1751, 512
        $region44: #{tpu_custom_call.1} parent=39 // pred_fallthru
          _
      $region40: #{tpu_custom_call.1} parent=5 // pred_fallthru
        _
    $region6: #{tpu_custom_call.1} parent=1 // loop_footer
      %s16 = sadd.s32 1, %s12
    $region7: #{tpu_custom_call.1} parent=1 // loop_footer_branch
      %11 = sbr.rel target = $region3
    $region8: #{tpu_custom_call.1} parent=1 // loop_exit
      _
    %1756 = vsyncpa [#allocation3], 1
    %s1757 = scalar_lea.sflag [#allocation3], 1
    %1758 = vsyncpa %s1757, 1

</llo_original>
